<compile_context>
chip_gen: v7x
topology: tpu7x:2x2x1
jax: 0.10.0
libtpu: 0.0.40
codegen_flags: <defaults>
</compile_context>

<pallas_src>
import functools
import math

import jax
import jax.numpy as jnp
import numpy as np
from jax import lax
from jax.experimental import pallas as pl
from jax.experimental.pallas import tpu as pltpu


# ----------------------------------------------------------------------------
# Fused whole-decoder Pallas kernel   (grid = (B, n_dec_layer))
# ----------------------------------------------------------------------------

def _decoder_kernel(x_ref, enc_ref, pmr_ref, pmc_ref,
                    m_wqkv_ref, c_wqkv_ref, wo_m_ref, wo_c_ref,
                    w1_ref, b1_ref, w2_ref, b2_ref,
                    o_ref, carry_ref,
                    *, n_head, d_k, d_v, eps, compute_dtype):
    layer = pl.program_id(1)
    last_layer = pl.num_programs(1) - 1

    # Initialize the carried decoder state at the first layer of each batch el.
    @pl.when(layer == 0)
    def _():
        carry_ref[...] = x_ref[0]

    x = carry_ref[...]            # (L, D) f32 decoder state
    enc = enc_ref[0]              # (L, D) encoder output (resident across layers)
    L = x.shape[0]
    cdt = compute_dtype
    hk = n_head * d_k
    inv_sqrt_dk = 1.0 / math.sqrt(d_k)

    # Build the masks in-kernel from the (L,) padding vector (VPU-only work)
    # instead of streaming two (B,L,L) f32 tensors from HBM.
    pad_outer = pmr_ref[0] * pmc_ref[0]                          # (L, L)
    rows = lax.broadcasted_iota(jnp.int32, (L, L), 0)
    cols = lax.broadcasted_iota(jnp.int32, (L, L), 1)
    tril = (rows >= cols).astype(jnp.float32)
    mask_pre = pad_outer * tril      # masked self-attn (applied pre-softmax)
    mask_post = pad_outer            # cross-attn       (applied post-softmax)

    def layer_norm(z):
        mu = jnp.mean(z, axis=-1, keepdims=True)
        var = jnp.mean((z - mu) ** 2, axis=-1, keepdims=True)
        return (z - mu) * lax.rsqrt(var + eps)      # gamma=1, beta=0 defaults

    def mha(src, v_src, wqkv, wo, pre_mask, post_mask):
        # One lane-dense MXU pass for Q||K of all heads, one for V of all heads.
        qk = jnp.dot(src.astype(cdt), wqkv[:, :2 * hk],
                     preferred_element_type=jnp.float32)
        v_all = jnp.dot(v_src.astype(cdt), wqkv[:, 2 * hk:],
                        preferred_element_type=jnp.float32)
        heads = []
        for h in range(n_head):                     # static unroll (small H)
            q = qk[:, h * d_k:(h + 1) * d_k]
            k = qk[:, hk + h * d_k:hk + (h + 1) * d_k]
            v = v_all[:, h * d_v:(h + 1) * d_v]
            s = lax.dot_general(q.astype(cdt), k.astype(cdt),
                                (((1,), (1,)), ((), ())),
                                preferred_element_type=jnp.float32)
            s = s * inv_sqrt_dk                     # (L, L) rows=query, cols=key
            if pre_mask is not None:                # multiplicative, pre-softmax
                s = s * pre_mask
            # nn.Softmax(dim=1) on (b, l, l) -> softmax over the QUERY axis (0)
            m = jnp.max(s, axis=0, keepdims=True)
            e = jnp.exp(s - m)
            p = e * pl.reciprocal(jnp.sum(e, axis=0, keepdims=True), approx=True)
            if post_mask is not None:               # multiplicative, post-softmax
                p = p * post_mask
            heads.append(jnp.dot(p.astype(cdt), v.astype(cdt),
                                 preferred_element_type=jnp.float32))
        # Single wide output-projection matmul (contraction H*d_v) instead of
        # H skinny matmuls that underfill the systolic array.
        hv = jnp.concatenate(heads, axis=1)          # (L, H*d_v)
        return jnp.dot(hv.astype(cdt), wo, preferred_element_type=jnp.float32)

    # --- masked multi-head self-attention + residual + LN ---
    a1 = mha(x, x, m_wqkv_ref[0], wo_m_ref[...], mask_pre, None)
    x1 = layer_norm(x + a1)                          # dropout = identity (eval)

    # --- cross multi-head attention (Q,K from enc; V from dec state) ---
    a2 = mha(enc, x1, c_wqkv_ref[0], wo_c_ref[...], None, mask_post)
    x2 = layer_norm(x1 + a2)

    # --- feed-forward + residual + LN ---
    hid = jnp.dot(x2.astype(cdt), w1_ref[...],
                  preferred_element_type=jnp.float32) + b1_ref[...]
    y = jnp.dot(hid.astype(cdt), w2_ref[...],
                preferred_element_type=jnp.float32) + b2_ref[...]
    x3 = layer_norm(x2 + y)

    carry_ref[...] = x3

    @pl.when(layer == last_layer)
    def _():
        o_ref[0] = x3.astype(o_ref.dtype)


def decoder_forward(params, enc_out, dec_inp, padding_mask,
                    *, n_dec_layer, n_head, d_k, d_v, eps=1e-5,
                    compute_dtype=jnp.bfloat16):
    B, L, D = enc_out.shape
    assert dec_inp.shape[1] == L, "reference semantics assume dec_max_len == L"
    assert d_k == d_v, "w_o is sized by n_head*d_k; reference needs d_k == d_v"

    x = dec_inp[:, :L, :]
    # Padding vector in both broadcast layouts (tiny: B*L floats each).
    pm_row = jnp.reshape(padding_mask, (B, L, 1)).astype(jnp.float32)
    pm_col = jnp.reshape(padding_mask, (B, 1, L)).astype(jnp.float32)

    # Pre-cast MXU weight operands (halves weight DMA for bf16).
    wdt = compute_dtype
    m_wqkv = params["m_wqkv_all"].astype(wdt)     # (n_layers, D, 2*H*dk + H*dv)
    c_wqkv = params["c_wqkv_all"].astype(wdt)
    wo_m = params["w_o_masked"].astype(wdt)
    wo_c = params["w_o_cross"].astype(wdt)
    w1 = params["w1"].astype(wdt)
    w2 = params["w2"].astype(wdt)
    b1 = params["b1"]                             # biases added in f32
    b2 = params["b2"]

    wqkv_w = m_wqkv.shape[-1]
    kern = functools.partial(_decoder_kernel, n_head=n_head, d_k=d_k, d_v=d_v,
                             eps=eps, compute_dtype=compute_dtype)

    in_specs = [
        pl.BlockSpec((1, L, D), lambda b, l: (b, 0, 0)),        # dec state init
        pl.BlockSpec((1, L, D), lambda b, l: (b, 0, 0)),        # enc_out
        pl.BlockSpec((1, L, 1), lambda b, l: (b, 0, 0)),        # padding (rows)
        pl.BlockSpec((1, 1, L), lambda b, l: (b, 0, 0)),        # padding (cols)
        pl.BlockSpec((1, D, wqkv_w), lambda b, l: (l, 0, 0)),   # per-layer QKV (masked)
        pl.BlockSpec((1, D, wqkv_w), lambda b, l: (l, 0, 0)),   # per-layer QKV (cross)
        pl.BlockSpec(wo_m.shape, lambda b, l: (0, 0)),          # shared weights:
        pl.BlockSpec(wo_c.shape, lambda b, l: (0, 0)),          #  constant index ->
        pl.BlockSpec(w1.shape, lambda b, l: (0, 0)),            #  VMEM-resident,
        pl.BlockSpec(b1.shape, lambda b, l: (0, 0)),            #  DMA'd once
        pl.BlockSpec(w2.shape, lambda b, l: (0, 0)),
        pl.BlockSpec(b2.shape, lambda b, l: (0, 0)),
    ]

    return pl.pallas_call(
        kern,
        out_shape=jax.ShapeDtypeStruct((B, L, D), jnp.float32),
        grid=(B, n_dec_layer),
        in_specs=in_specs,
        out_specs=pl.BlockSpec((1, L, D), lambda b, l: (b, 0, 0)),
        scratch_shapes=[pltpu.VMEM((L, D), jnp.float32)],       # carried state
        compiler_params=pltpu.CompilerParams(
            dimension_semantics=("parallel", "arbitrary"),
            vmem_limit_bytes=32 * 1024 * 1024),
    )(x, enc_out, pm_row, pm_col, m_wqkv, c_wqkv,
      wo_m, wo_c, w1, b1, w2, b2)


# ----------------------------------------------------------------------------
# Pure-JAX reference (mirrors the torch math) for correctness checking
# ----------------------------------------------------------------------------

def _ref_mha(src, vsrc, wq, wk, wv, w_o, pad_outer, sub, masked, d_k):
    heads = []
    for h in range(wq.shape[0]):
        q = src @ wq[h]
        k = src @ wk[h]
        v = vsrc @ wv[h]
        t = jnp.einsum('bik,bjk->bij', q, k) / math.sqrt(d_k)
        if masked:
            t = t * pad_outer * sub[None]
        t = jax.nn.softmax(t, axis=1)
        if not masked:
            t = t * pad_outer
        heads.append(jnp.einsum('bij,bjk->bik', t, v))
    return jnp.concatenate(heads, axis=2) @ w_o


def _ref_ln(x, eps=1e-5):
    mu = jnp.mean(x, axis=-1, keepdims=True)
    var = jnp.mean((x - mu) ** 2, axis=-1, keepdims=True)
    return (x - mu) / jnp.sqrt(var + eps)


def ref_decoder(params, enc_out, dec_inp, padding_mask, *, n_dec_layer, d_k):
    B, L, D = enc_out.shape
    out = dec_inp[:, :L, :]
    sub = jnp.tril(jnp.ones((dec_inp.shape[1], dec_inp.shape[1]), jnp.float32))
    pad_outer = padding_mask[:, :, None] * padding_mask[:, None, :]
    for layer in range(n_dec_layer):
        lw = params["layers"][layer]
        inp = out
        out = _ref_mha(out, out, lw["m_wq"], lw["m_wk"], lw["m_wv"],
                       params["w_o_masked"], pad_outer, sub, True, d_k)
        out = _ref_ln(inp + out)
        inp = out
        out = _ref_mha(enc_out, inp, lw["c_wq"], lw["c_wk"], lw["c_wv"],
                       params["w_o_cross"], pad_outer, sub, False, d_k)
        out = _ref_ln(inp + out)
        inp = out
        out = (out @ params["w1"] + params["b1"]) @ params["w2"] + params["b2"]
        out = _ref_ln(inp + out)
    return out


# ----------------------------------------------------------------------------
# Deterministic parameter init (xavier-uniform-like, shapes from __init__)
# ----------------------------------------------------------------------------

def _xavier(key, shape):
    fan_in, fan_out = shape[-2], shape[-1]
    bound = math.sqrt(6.0 / (fan_in + fan_out))
    return jax.random.uniform(key, shape, jnp.float32, -bound, bound)


def _stack_qkv(wq, wk, wv):
    """(H,D,dk),(H,D,dk),(H,D,dv) -> (D, 2*H*dk + H*dv) stacked per-head."""
    H, D, dk = wq.shape
    dv = wv.shape[-1]
    wq_s = jnp.transpose(wq, (1, 0, 2)).reshape(D, H * dk)
    wk_s = jnp.transpose(wk, (1, 0, 2)).reshape(D, H * dk)
    wv_s = jnp.transpose(wv, (1, 0, 2)).reshape(D, H * dv)
    return jnp.concatenate([wq_s, wk_s, wv_s], axis=1)


def build_params(key, dim_model, d_k, d_v, n_head, dim_hidden, n_dec_layer):
    keys = jax.random.split(key, 6 * n_dec_layer + 6)
    layers = []
    for i in range(n_dec_layer):
        k = keys[6 * i:6 * (i + 1)]
        layers.append(dict(
            m_wq=_xavier(k[0], (n_head, dim_model, d_k)),
            m_wk=_xavier(k[1], (n_head, dim_model, d_k)),
            m_wv=_xavier(k[2], (n_head, dim_model, d_v)),
            c_wq=_xavier(k[3], (n_head, dim_model, d_k)),
            c_wk=_xavier(k[4], (n_head, dim_model, d_k)),
            c_wv=_xavier(k[5], (n_head, dim_model, d_v)),
        ))
    k = keys[6 * n_dec_layer:]
    # QKV stacking hoisted here (done once), pre-stacked across layers so the
    # kernel can index the layer grid axis directly.
    m_wqkv_all = jnp.stack(
        [_stack_qkv(l["m_wq"], l["m_wk"], l["m_wv"]) for l in layers])
    c_wqkv_all = jnp.stack(
        [_stack_qkv(l["c_wq"], l["c_wk"], l["c_wv"]) for l in layers])
    return dict(
        layers=layers,
        m_wqkv_all=m_wqkv_all,
        c_wqkv_all=c_wqkv_all,
        w_o_masked=_xavier(k[0], (n_head * d_k, dim_model)),
        w_o_cross=_xavier(k[1], (n_head * d_k, dim_model)),
        w1=_xavier(k[2], (dim_model, dim_hidden)),          # fc_1.weight.T
        b1=0.01 * jax.random.normal(k[3], (1, dim_hidden), jnp.float32),
        w2=_xavier(k[4], (dim_hidden, dim_model)),          # fc_2.weight.T
        b2=0.01 * jax.random.normal(k[5], (1, dim_model), jnp.float32),
    )


# ----------------------------------------------------------------------------

if __name__ == "__main__":
    B, L = 2, 8
    dim_model, d_k, d_v, n_head, dim_hidden = 32, 16, 16, 2, 64
    d_prob, n_dec_layer = 0.1, 2

    key = jax.random.PRNGKey(0)
    k_enc, k_dec, k_par = jax.random.split(key, 3)
    enc_out = jax.random.normal(k_enc, (B, L, dim_model), jnp.float32)
    dec_inp = jax.random.normal(k_dec, (B, L, dim_model), jnp.float32)
    padding_mask = jnp.array([[1, 1, 1, 1, 1, 1, 0, 0],
                              [1, 1, 1, 1, 1, 0, 0, 0]], jnp.float32)

    params = build_params(k_par, dim_model, d_k, d_v, n_head,
                          dim_hidden, n_dec_layer)

    ref = ref_decoder(params, enc_out, dec_inp, padding_mask,
                      n_dec_layer=n_dec_layer, d_k=d_k)

    # f32 MXU path: tight check against the pure-JAX reference.
    out_f32 = decoder_forward(params, enc_out, dec_inp, padding_mask,
                              n_dec_layer=n_dec_layer, n_head=n_head,
                              d_k=d_k, d_v=d_v, compute_dtype=jnp.float32)
    out_f32 = jax.block_until_ready(out_f32)
    np.testing.assert_allclose(np.asarray(out_f32), np.asarray(ref),
                               atol=1e-2, rtol=1e-2)

    # bf16 MXU path (production setting per perf review): looser check.
    out_bf16 = decoder_forward(params, enc_out, dec_inp, padding_mask,
                               n_dec_layer=n_dec_layer, n_head=n_head,
                               d_k=d_k, d_v=d_v, compute_dtype=jnp.bfloat16)
    out_bf16 = jax.block_until_ready(out_bf16)
    np.testing.assert_allclose(np.asarray(out_bf16), np.asarray(ref),
                               atol=5e-2, rtol=5e-2)

    print("KERNEL_OK")
</pallas_src>

<mosaic_0001>
module attributes {stable_mosaic.version = 11 : i64} {
  func.func @_decoder_kernel(%arg0: i32, %arg1: i32, %arg2: memref<1x8x32xf32, #tpu.memory_space<vmem>>, %arg3: memref<1x8x32xf32, #tpu.memory_space<vmem>>, %arg4: memref<1x8x1xf32, #tpu.memory_space<vmem>>, %arg5: memref<1x1x8xf32, #tpu.memory_space<vmem>>, %arg6: memref<1x32x96xf32, #tpu.memory_space<vmem>>, %arg7: memref<1x32x96xf32, #tpu.memory_space<vmem>>, %arg8: memref<32x32xf32, #tpu.memory_space<vmem>>, %arg9: memref<32x32xf32, #tpu.memory_space<vmem>>, %arg10: memref<32x64xf32, #tpu.memory_space<vmem>>, %arg11: memref<1x64xf32, #tpu.memory_space<vmem>>, %arg12: memref<64x32xf32, #tpu.memory_space<vmem>>, %arg13: memref<1x32xf32, #tpu.memory_space<vmem>>, %arg14: memref<1x8x32xf32, #tpu.memory_space<vmem>>, %arg15: memref<8x32xf32, #tpu.memory_space<vmem>>) attributes {dimension_semantics = [#tpu.dimension_semantics<parallel>, #tpu.dimension_semantics<arbitrary>], iteration_bounds = array<i64: 2, 2>, scalar_prefetch = 0 : i64, scratch_operands = 1 : i64, tpu.core_type = #tpu.core_type<tc>, window_params = [{transform_indices = @transform_0, window_bounds = array<i64: 1, 8, 32>}, {transform_indices = @transform_1, window_bounds = array<i64: 1, 8, 32>}, {transform_indices = @transform_2, window_bounds = array<i64: 1, 8, 1>}, {transform_indices = @transform_3, window_bounds = array<i64: 1, 1, 8>}, {transform_indices = @transform_4, window_bounds = array<i64: 1, 32, 96>}, {transform_indices = @transform_5, window_bounds = array<i64: 1, 32, 96>}, {pipeline_mode = #tpu.pipeline_mode<synchronous>, transform_indices = @transform_6, window_bounds = array<i64: 32, 32>}, {pipeline_mode = #tpu.pipeline_mode<synchronous>, transform_indices = @transform_7, window_bounds = array<i64: 32, 32>}, {pipeline_mode = #tpu.pipeline_mode<synchronous>, transform_indices = @transform_8, window_bounds = array<i64: 32, 64>}, {pipeline_mode = #tpu.pipeline_mode<synchronous>, transform_indices = @transform_9, window_bounds = array<i64: 1, 64>}, {pipeline_mode = #tpu.pipeline_mode<synchronous>, transform_indices = @transform_10, window_bounds = array<i64: 64, 32>}, {pipeline_mode = #tpu.pipeline_mode<synchronous>, transform_indices = @transform_11, window_bounds = array<i64: 1, 32>}, {transform_indices = @transform_12, window_bounds = array<i64: 1, 8, 32>}]} {
    %c0_i32 = arith.constant 0 : i32
    %0 = arith.cmpi eq, %arg1, %c0_i32 : i32
    %1 = arith.extui %0 : i1 to i32
    %c0_i32_0 = arith.constant 0 : i32
    %2 = arith.cmpi ne, %1, %c0_i32_0 : i32
    scf.if %2 {
      %c0_74 = arith.constant 0 : index
      %c0_75 = arith.constant 0 : index
      %c0_76 = arith.constant 0 : index
      %180 = vector.load %arg2[%c0_74, %c0_75, %c0_76] : memref<1x8x32xf32, #tpu.memory_space<vmem>>, vector<1x8x32xf32>
      %181 = vector.shape_cast %180 : vector<1x8x32xf32> to vector<8x32xf32>
      %c0_77 = arith.constant 0 : index
      %c0_78 = arith.constant 0 : index
      %182 = vector.load %arg15[%c0_77, %c0_78] : memref<8x32xf32, #tpu.memory_space<vmem>>, vector<8x32xf32>
      tpu.vector_store %arg15[%c0_77, %c0_78], %181 {strides = array<i32>} : memref<8x32xf32, #tpu.memory_space<vmem>>, vector<8x32xf32>,
    } else {
    }
    %c0 = arith.constant 0 : index
    %c0_1 = arith.constant 0 : index
    %3 = vector.load %arg15[%c0, %c0_1] : memref<8x32xf32, #tpu.memory_space<vmem>>, vector<8x32xf32>
    %c0_2 = arith.constant 0 : index
    %c0_3 = arith.constant 0 : index
    %c0_4 = arith.constant 0 : index
    %4 = vector.load %arg3[%c0_2, %c0_3, %c0_4] : memref<1x8x32xf32, #tpu.memory_space<vmem>>, vector<1x8x32xf32>
    %5 = vector.shape_cast %4 : vector<1x8x32xf32> to vector<8x32xf32>
    %c0_5 = arith.constant 0 : index
    %c0_6 = arith.constant 0 : index
    %c0_7 = arith.constant 0 : index
    %6 = vector.load %arg4[%c0_5, %c0_6, %c0_7] : memref<1x8x1xf32, #tpu.memory_space<vmem>>, vector<1x8x1xf32>
    %7 = vector.shape_cast %6 : vector<1x8x1xf32> to vector<8x1xf32>
    %c0_8 = arith.constant 0 : index
    %c0_9 = arith.constant 0 : index
    %c0_10 = arith.constant 0 : index
    %8 = vector.load %arg5[%c0_8, %c0_9, %c0_10] : memref<1x1x8xf32, #tpu.memory_space<vmem>>, vector<1x1x8xf32>
    %9 = vector.shape_cast %8 : vector<1x1x8xf32> to vector<1x8xf32>
    %10 = vector.broadcast %7 : vector<8x1xf32> to vector<8x8xf32>
    %11 = vector.broadcast %9 : vector<1x8xf32> to vector<8x8xf32>
    %12 = arith.mulf %10, %11 : vector<8x8xf32>
    %13 = tpu.iota {dimensions = array<i32: 0>} : vector<8x8xi32>
    %14 = tpu.iota {dimensions = array<i32: 1>} : vector<8x8xi32>
    %15 = arith.cmpi sge, %13, %14 : vector<8x8xi32>
    %16 = arith.extui %15 : vector<8x8xi1> to vector<8x8xi32>
    %17 = arith.sitofp %16 : vector<8x8xi32> to vector<8x8xf32>
    %18 = arith.mulf %12, %17 : vector<8x8xf32>
    %c0_11 = arith.constant 0 : index
    %c0_12 = arith.constant 0 : index
    %c0_13 = arith.constant 0 : index
    %19 = vector.load %arg6[%c0_11, %c0_12, %c0_13] : memref<1x32x96xf32, #tpu.memory_space<vmem>>, vector<1x32x96xf32>
    %20 = vector.shape_cast %19 : vector<1x32x96xf32> to vector<32x96xf32>
    %c0_14 = arith.constant 0 : index
    %c0_15 = arith.constant 0 : index
    %21 = vector.load %arg8[%c0_14, %c0_15] : memref<32x32xf32, #tpu.memory_space<vmem>>, vector<32x32xf32>
    %22 = vector.extract_strided_slice %20 {offsets = [0, 0], sizes = [32, 64], strides = [1, 1]} : vector<32x96xf32> to vector<32x64xf32>
    %cst = arith.constant dense<0.000000e+00> : vector<8x64xf32>
    %23 = tpu.matmul %3, %22, %cst {dimension_numbers = #tpu.dot_dimension_numbers<[1], [0], [0], [1], [0, 0, 1, 1], [], []>} : vector<8x32xf32>, vector<32x64xf32>, vector<8x64xf32> -> vector<8x64xf32>
    %24 = vector.extract_strided_slice %20 {offsets = [0, 64], sizes = [32, 32], strides = [1, 1]} : vector<32x96xf32> to vector<32x32xf32>
    %cst_16 = arith.constant dense<0.000000e+00> : vector<8x32xf32>
    %25 = tpu.matmul %3, %24, %cst_16 {dimension_numbers = #tpu.dot_dimension_numbers<[1], [0], [0], [1], [0, 0, 1, 1], [], []>} : vector<8x32xf32>, vector<32x32xf32>, vector<8x32xf32> -> vector<8x32xf32>
    %26 = vector.extract_strided_slice %23 {offsets = [0, 0], sizes = [8, 16], strides = [1, 1]} : vector<8x64xf32> to vector<8x16xf32>
    %27 = vector.extract_strided_slice %23 {offsets = [0, 32], sizes = [8, 16], strides = [1, 1]} : vector<8x64xf32> to vector<8x16xf32>
    %28 = vector.extract_strided_slice %25 {offsets = [0, 0], sizes = [8, 16], strides = [1, 1]} : vector<8x32xf32> to vector<8x16xf32>
    %cst_17 = arith.constant dense<0.000000e+00> : vector<8x8xf32>
    %29 = tpu.matmul %26, %27, %cst_17 {dimension_numbers = #tpu.dot_dimension_numbers<[1], [1], [0], [0], [0, 0, 1, 0], [], []>} : vector<8x16xf32>, vector<8x16xf32>, vector<8x8xf32> -> vector<8x8xf32>
    %cst_18 = arith.constant 2.500000e-01 : f32
    %30 = vector.broadcast %cst_18 : f32 to vector<8x8xf32>
    %31 = arith.mulf %29, %30 : vector<8x8xf32>
    %32 = arith.mulf %31, %18 : vector<8x8xf32>
    %cst_19 = arith.constant dense<0xFF800000> : vector<8xf32>
    %33 = vector.multi_reduction <maximumf>, %32, %cst_19 [0] : vector<8x8xf32> to vector<8xf32>
    %34 = vector.shape_cast %33 : vector<8xf32> to vector<1x8xf32>
    %35 = vector.broadcast %34 : vector<1x8xf32> to vector<8x8xf32>
    %36 = arith.subf %32, %35 : vector<8x8xf32>
    %37 = math.exp %36 : vector<8x8xf32>
    %cst_20 = arith.constant dense<0.000000e+00> : vector<8xf32>
    %38 = vector.multi_reduction <add>, %37, %cst_20 [0] : vector<8x8xf32> to vector<8xf32>
    %39 = vector.shape_cast %38 : vector<8xf32> to vector<1x8xf32>
    %40 = tpu.reciprocal %39 {approx = true} : vector<1x8xf32> -> vector<1x8xf32>
    %41 = vector.broadcast %40 : vector<1x8xf32> to vector<8x8xf32>
    %42 = arith.mulf %37, %41 : vector<8x8xf32>
    %cst_21 = arith.constant dense<0.000000e+00> : vector<8x16xf32>
    %43 = tpu.matmul %42, %28, %cst_21 {dimension_numbers = #tpu.dot_dimension_numbers<[1], [0], [0], [1], [0, 0, 1, 1], [], []>} : vector<8x8xf32>, vector<8x16xf32>, vector<8x16xf32> -> vector<8x16xf32>
    %44 = vector.extract_strided_slice %23 {offsets = [0, 16], sizes = [8, 16], strides = [1, 1]} : vector<8x64xf32> to vector<8x16xf32>
    %45 = vector.extract_strided_slice %23 {offsets = [0, 48], sizes = [8, 16], strides = [1, 1]} : vector<8x64xf32> to vector<8x16xf32>
    %46 = vector.extract_strided_slice %25 {offsets = [0, 16], sizes = [8, 16], strides = [1, 1]} : vector<8x32xf32> to vector<8x16xf32>
    %cst_22 = arith.constant dense<0.000000e+00> : vector<8x8xf32>
    %47 = tpu.matmul %44, %45, %cst_22 {dimension_numbers = #tpu.dot_dimension_numbers<[1], [1], [0], [0], [0, 0, 1, 0], [], []>} : vector<8x16xf32>, vector<8x16xf32>, vector<8x8xf32> -> vector<8x8xf32>
    %cst_23 = arith.constant 2.500000e-01 : f32
    %48 = vector.broadcast %cst_23 : f32 to vector<8x8xf32>
    %49 = arith.mulf %47, %48 : vector<8x8xf32>
    %50 = arith.mulf %49, %18 : vector<8x8xf32>
    %cst_24 = arith.constant dense<0xFF800000> : vector<8xf32>
    %51 = vector.multi_reduction <maximumf>, %50, %cst_24 [0] : vector<8x8xf32> to vector<8xf32>
    %52 = vector.shape_cast %51 : vector<8xf32> to vector<1x8xf32>
    %53 = vector.broadcast %52 : vector<1x8xf32> to vector<8x8xf32>
    %54 = arith.subf %50, %53 : vector<8x8xf32>
    %55 = math.exp %54 : vector<8x8xf32>
    %cst_25 = arith.constant dense<0.000000e+00> : vector<8xf32>
    %56 = vector.multi_reduction <add>, %55, %cst_25 [0] : vector<8x8xf32> to vector<8xf32>
    %57 = vector.shape_cast %56 : vector<8xf32> to vector<1x8xf32>
    %58 = tpu.reciprocal %57 {approx = true} : vector<1x8xf32> -> vector<1x8xf32>
    %59 = vector.broadcast %58 : vector<1x8xf32> to vector<8x8xf32>
    %60 = arith.mulf %55, %59 : vector<8x8xf32>
    %cst_26 = arith.constant dense<0.000000e+00> : vector<8x16xf32>
    %61 = tpu.matmul %60, %46, %cst_26 {dimension_numbers = #tpu.dot_dimension_numbers<[1], [0], [0], [1], [0, 0, 1, 1], [], []>} : vector<8x8xf32>, vector<8x16xf32>, vector<8x16xf32> -> vector<8x16xf32>
    %62 = tpu.concatenate %43, %61 in 1 : vector<8x16xf32>, vector<8x16xf32> -> vector<8x32xf32>
    %cst_27 = arith.constant dense<0.000000e+00> : vector<8x32xf32>
    %63 = tpu.matmul %62, %21, %cst_27 {dimension_numbers = #tpu.dot_dimension_numbers<[1], [0], [0], [1], [0, 0, 1, 1], [], []>} : vector<8x32xf32>, vector<32x32xf32>, vector<8x32xf32> -> vector<8x32xf32>
    %64 = arith.addf %3, %63 : vector<8x32xf32>
    %cst_28 = arith.constant dense<0.000000e+00> : vector<8xf32>
    %65 = vector.multi_reduction <add>, %64, %cst_28 [1] : vector<8x32xf32> to vector<8xf32>
    %66 = vector.shape_cast %65 : vector<8xf32> to vector<8x1xf32>
    %cst_29 = arith.constant 3.200000e+01 : f32
    %67 = vector.broadcast %cst_29 : f32 to vector<8x1xf32>
    %68 = arith.divf %66, %67 : vector<8x1xf32>
    %69 = vector.broadcast %68 : vector<8x1xf32> to vector<8x32xf32>
    %70 = arith.subf %64, %69 : vector<8x32xf32>
    %71 = arith.mulf %70, %70 : vector<8x32xf32>
    %cst_30 = arith.constant dense<0.000000e+00> : vector<8xf32>
    %72 = vector.multi_reduction <add>, %71, %cst_30 [1] : vector<8x32xf32> to vector<8xf32>
    %73 = vector.shape_cast %72 : vector<8xf32> to vector<8x1xf32>
    %cst_31 = arith.constant 3.200000e+01 : f32
    %74 = vector.broadcast %cst_31 : f32 to vector<8x1xf32>
    %75 = arith.divf %73, %74 : vector<8x1xf32>
    %76 = vector.broadcast %68 : vector<8x1xf32> to vector<8x32xf32>
    %77 = arith.subf %64, %76 : vector<8x32xf32>
    %cst_32 = arith.constant 9.99999974E-6 : f32
    %78 = vector.broadcast %cst_32 : f32 to vector<8x1xf32>
    %79 = arith.addf %75, %78 : vector<8x1xf32>
    %80 = math.rsqrt %79 : vector<8x1xf32>
    %81 = vector.broadcast %80 : vector<8x1xf32> to vector<8x32xf32>
    %82 = arith.mulf %77, %81 : vector<8x32xf32>
    %c0_33 = arith.constant 0 : index
    %c0_34 = arith.constant 0 : index
    %c0_35 = arith.constant 0 : index
    %83 = vector.load %arg7[%c0_33, %c0_34, %c0_35] : memref<1x32x96xf32, #tpu.memory_space<vmem>>, vector<1x32x96xf32>
    %84 = vector.shape_cast %83 : vector<1x32x96xf32> to vector<32x96xf32>
    %c0_36 = arith.constant 0 : index
    %c0_37 = arith.constant 0 : index
    %85 = vector.load %arg9[%c0_36, %c0_37] : memref<32x32xf32, #tpu.memory_space<vmem>>, vector<32x32xf32>
    %86 = vector.extract_strided_slice %84 {offsets = [0, 0], sizes = [32, 64], strides = [1, 1]} : vector<32x96xf32> to vector<32x64xf32>
    %cst_38 = arith.constant dense<0.000000e+00> : vector<8x64xf32>
    %87 = tpu.matmul %5, %86, %cst_38 {dimension_numbers = #tpu.dot_dimension_numbers<[1], [0], [0], [1], [0, 0, 1, 1], [], []>} : vector<8x32xf32>, vector<32x64xf32>, vector<8x64xf32> -> vector<8x64xf32>
    %88 = vector.extract_strided_slice %84 {offsets = [0, 64], sizes = [32, 32], strides = [1, 1]} : vector<32x96xf32> to vector<32x32xf32>
    %cst_39 = arith.constant dense<0.000000e+00> : vector<8x32xf32>
    %89 = tpu.matmul %82, %88, %cst_39 {dimension_numbers = #tpu.dot_dimension_numbers<[1], [0], [0], [1], [0, 0, 1, 1], [], []>} : vector<8x32xf32>, vector<32x32xf32>, vector<8x32xf32> -> vector<8x32xf32>
    %90 = vector.extract_strided_slice %87 {offsets = [0, 0], sizes = [8, 16], strides = [1, 1]} : vector<8x64xf32> to vector<8x16xf32>
    %91 = vector.extract_strided_slice %87 {offsets = [0, 32], sizes = [8, 16], strides = [1, 1]} : vector<8x64xf32> to vector<8x16xf32>
    %92 = vector.extract_strided_slice %89 {offsets = [0, 0], sizes = [8, 16], strides = [1, 1]} : vector<8x32xf32> to vector<8x16xf32>
    %cst_40 = arith.constant dense<0.000000e+00> : vector<8x8xf32>
    %93 = tpu.matmul %90, %91, %cst_40 {dimension_numbers = #tpu.dot_dimension_numbers<[1], [1], [0], [0], [0, 0, 1, 0], [], []>} : vector<8x16xf32>, vector<8x16xf32>, vector<8x8xf32> -> vector<8x8xf32>
    %cst_41 = arith.constant 2.500000e-01 : f32
    %94 = vector.broadcast %cst_41 : f32 to vector<8x8xf32>
    %95 = arith.mulf %93, %94 : vector<8x8xf32>
    %cst_42 = arith.constant dense<0xFF800000> : vector<8xf32>
    %96 = vector.multi_reduction <maximumf>, %95, %cst_42 [0] : vector<8x8xf32> to vector<8xf32>
    %97 = vector.shape_cast %96 : vector<8xf32> to vector<1x8xf32>
    %98 = vector.broadcast %97 : vector<1x8xf32> to vector<8x8xf32>
    %99 = arith.subf %95, %98 : vector<8x8xf32>
    %100 = math.exp %99 : vector<8x8xf32>
    %cst_43 = arith.constant dense<0.000000e+00> : vector<8xf32>
    %101 = vector.multi_reduction <add>, %100, %cst_43 [0] : vector<8x8xf32> to vector<8xf32>
    %102 = vector.shape_cast %101 : vector<8xf32> to vector<1x8xf32>
    %103 = tpu.reciprocal %102 {approx = true} : vector<1x8xf32> -> vector<1x8xf32>
    %104 = vector.broadcast %103 : vector<1x8xf32> to vector<8x8xf32>
    %105 = arith.mulf %100, %104 : vector<8x8xf32>
    %106 = arith.mulf %105, %12 : vector<8x8xf32>
    %cst_44 = arith.constant dense<0.000000e+00> : vector<8x16xf32>
    %107 = tpu.matmul %106, %92, %cst_44 {dimension_numbers = #tpu.dot_dimension_numbers<[1], [0], [0], [1], [0, 0, 1, 1], [], []>} : vector<8x8xf32>, vector<8x16xf32>, vector<8x16xf32> -> vector<8x16xf32>
    %108 = vector.extract_strided_slice %87 {offsets = [0, 16], sizes = [8, 16], strides = [1, 1]} : vector<8x64xf32> to vector<8x16xf32>
    %109 = vector.extract_strided_slice %87 {offsets = [0, 48], sizes = [8, 16], strides = [1, 1]} : vector<8x64xf32> to vector<8x16xf32>
    %110 = vector.extract_strided_slice %89 {offsets = [0, 16], sizes = [8, 16], strides = [1, 1]} : vector<8x32xf32> to vector<8x16xf32>
    %cst_45 = arith.constant dense<0.000000e+00> : vector<8x8xf32>
    %111 = tpu.matmul %108, %109, %cst_45 {dimension_numbers = #tpu.dot_dimension_numbers<[1], [1], [0], [0], [0, 0, 1, 0], [], []>} : vector<8x16xf32>, vector<8x16xf32>, vector<8x8xf32> -> vector<8x8xf32>
    %cst_46 = arith.constant 2.500000e-01 : f32
    %112 = vector.broadcast %cst_46 : f32 to vector<8x8xf32>
    %113 = arith.mulf %111, %112 : vector<8x8xf32>
    %cst_47 = arith.constant dense<0xFF800000> : vector<8xf32>
    %114 = vector.multi_reduction <maximumf>, %113, %cst_47 [0] : vector<8x8xf32> to vector<8xf32>
    %115 = vector.shape_cast %114 : vector<8xf32> to vector<1x8xf32>
    %116 = vector.broadcast %115 : vector<1x8xf32> to vector<8x8xf32>
    %117 = arith.subf %113, %116 : vector<8x8xf32>
    %118 = math.exp %117 : vector<8x8xf32>
    %cst_48 = arith.constant dense<0.000000e+00> : vector<8xf32>
    %119 = vector.multi_reduction <add>, %118, %cst_48 [0] : vector<8x8xf32> to vector<8xf32>
    %120 = vector.shape_cast %119 : vector<8xf32> to vector<1x8xf32>
    %121 = tpu.reciprocal %120 {approx = true} : vector<1x8xf32> -> vector<1x8xf32>
    %122 = vector.broadcast %121 : vector<1x8xf32> to vector<8x8xf32>
    %123 = arith.mulf %118, %122 : vector<8x8xf32>
    %124 = arith.mulf %123, %12 : vector<8x8xf32>
    %cst_49 = arith.constant dense<0.000000e+00> : vector<8x16xf32>
    %125 = tpu.matmul %124, %110, %cst_49 {dimension_numbers = #tpu.dot_dimension_numbers<[1], [0], [0], [1], [0, 0, 1, 1], [], []>} : vector<8x8xf32>, vector<8x16xf32>, vector<8x16xf32> -> vector<8x16xf32>
    %126 = tpu.concatenate %107, %125 in 1 : vector<8x16xf32>, vector<8x16xf32> -> vector<8x32xf32>
    %cst_50 = arith.constant dense<0.000000e+00> : vector<8x32xf32>
    %127 = tpu.matmul %126, %85, %cst_50 {dimension_numbers = #tpu.dot_dimension_numbers<[1], [0], [0], [1], [0, 0, 1, 1], [], []>} : vector<8x32xf32>, vector<32x32xf32>, vector<8x32xf32> -> vector<8x32xf32>
    %128 = arith.addf %82, %127 : vector<8x32xf32>
    %cst_51 = arith.constant dense<0.000000e+00> : vector<8xf32>
    %129 = vector.multi_reduction <add>, %128, %cst_51 [1] : vector<8x32xf32> to vector<8xf32>
    %130 = vector.shape_cast %129 : vector<8xf32> to vector<8x1xf32>
    %cst_52 = arith.constant 3.200000e+01 : f32
    %131 = vector.broadcast %cst_52 : f32 to vector<8x1xf32>
    %132 = arith.divf %130, %131 : vector<8x1xf32>
    %133 = vector.broadcast %132 : vector<8x1xf32> to vector<8x32xf32>
    %134 = arith.subf %128, %133 : vector<8x32xf32>
    %135 = arith.mulf %134, %134 : vector<8x32xf32>
    %cst_53 = arith.constant dense<0.000000e+00> : vector<8xf32>
    %136 = vector.multi_reduction <add>, %135, %cst_53 [1] : vector<8x32xf32> to vector<8xf32>
    %137 = vector.shape_cast %136 : vector<8xf32> to vector<8x1xf32>
    %cst_54 = arith.constant 3.200000e+01 : f32
    %138 = vector.broadcast %cst_54 : f32 to vector<8x1xf32>
    %139 = arith.divf %137, %138 : vector<8x1xf32>
    %140 = vector.broadcast %132 : vector<8x1xf32> to vector<8x32xf32>
    %141 = arith.subf %128, %140 : vector<8x32xf32>
    %cst_55 = arith.constant 9.99999974E-6 : f32
    %142 = vector.broadcast %cst_55 : f32 to vector<8x1xf32>
    %143 = arith.addf %139, %142 : vector<8x1xf32>
    %144 = math.rsqrt %143 : vector<8x1xf32>
    %145 = vector.broadcast %144 : vector<8x1xf32> to vector<8x32xf32>
    %146 = arith.mulf %141, %145 : vector<8x32xf32>
    %c0_56 = arith.constant 0 : index
    %c0_57 = arith.constant 0 : index
    %147 = vector.load %arg10[%c0_56, %c0_57] : memref<32x64xf32, #tpu.memory_space<vmem>>, vector<32x64xf32>
    %cst_58 = arith.constant dense<0.000000e+00> : vector<8x64xf32>
    %148 = tpu.matmul %146, %147, %cst_58 {dimension_numbers = #tpu.dot_dimension_numbers<[1], [0], [0], [1], [0, 0, 1, 1], [], []>} : vector<8x32xf32>, vector<32x64xf32>, vector<8x64xf32> -> vector<8x64xf32>
    %c0_59 = arith.constant 0 : index
    %c0_60 = arith.constant 0 : index
    %149 = vector.load %arg11[%c0_59, %c0_60] : memref<1x64xf32, #tpu.memory_space<vmem>>, vector<1x64xf32>
    %150 = vector.broadcast %149 : vector<1x64xf32> to vector<8x64xf32>
    %151 = arith.addf %148, %150 : vector<8x64xf32>
    %c0_61 = arith.constant 0 : index
    %c0_62 = arith.constant 0 : index
    %152 = vector.load %arg12[%c0_61, %c0_62] : memref<64x32xf32, #tpu.memory_space<vmem>>, vector<64x32xf32>
    %cst_63 = arith.constant dense<0.000000e+00> : vector<8x32xf32>
    %153 = tpu.matmul %151, %152, %cst_63 {dimension_numbers = #tpu.dot_dimension_numbers<[1], [0], [0], [1], [0, 0, 1, 1], [], []>} : vector<8x64xf32>, vector<64x32xf32>, vector<8x32xf32> -> vector<8x32xf32>
    %c0_64 = arith.constant 0 : index
    %c0_65 = arith.constant 0 : index
    %154 = vector.load %arg13[%c0_64, %c0_65] : memref<1x32xf32, #tpu.memory_space<vmem>>, vector<1x32xf32>
    %155 = vector.broadcast %154 : vector<1x32xf32> to vector<8x32xf32>
    %156 = arith.addf %153, %155 : vector<8x32xf32>
    %157 = arith.addf %146, %156 : vector<8x32xf32>
    %cst_66 = arith.constant dense<0.000000e+00> : vector<8xf32>
    %158 = vector.multi_reduction <add>, %157, %cst_66 [1] : vector<8x32xf32> to vector<8xf32>
    %159 = vector.shape_cast %158 : vector<8xf32> to vector<8x1xf32>
    %cst_67 = arith.constant 3.200000e+01 : f32
    %160 = vector.broadcast %cst_67 : f32 to vector<8x1xf32>
    %161 = arith.divf %159, %160 : vector<8x1xf32>
    %162 = vector.broadcast %161 : vector<8x1xf32> to vector<8x32xf32>
    %163 = arith.subf %157, %162 : vector<8x32xf32>
    %164 = arith.mulf %163, %163 : vector<8x32xf32>
    %cst_68 = arith.constant dense<0.000000e+00> : vector<8xf32>
    %165 = vector.multi_reduction <add>, %164, %cst_68 [1] : vector<8x32xf32> to vector<8xf32>
    %166 = vector.shape_cast %165 : vector<8xf32> to vector<8x1xf32>
    %cst_69 = arith.constant 3.200000e+01 : f32
    %167 = vector.broadcast %cst_69 : f32 to vector<8x1xf32>
    %168 = arith.divf %166, %167 : vector<8x1xf32>
    %169 = vector.broadcast %161 : vector<8x1xf32> to vector<8x32xf32>
    %170 = arith.subf %157, %169 : vector<8x32xf32>
    %cst_70 = arith.constant 9.99999974E-6 : f32
    %171 = vector.broadcast %cst_70 : f32 to vector<8x1xf32>
    %172 = arith.addf %168, %171 : vector<8x1xf32>
    %173 = math.rsqrt %172 : vector<8x1xf32>
    %174 = vector.broadcast %173 : vector<8x1xf32> to vector<8x32xf32>
    %175 = arith.mulf %170, %174 : vector<8x32xf32>
    %c0_71 = arith.constant 0 : index
    %c0_72 = arith.constant 0 : index
    %176 = vector.load %arg15[%c0_71, %c0_72] : memref<8x32xf32, #tpu.memory_space<vmem>>, vector<8x32xf32>
    tpu.vector_store %arg15[%c0_71, %c0_72], %175 {strides = array<i32>} : memref<8x32xf32, #tpu.memory_space<vmem>>, vector<8x32xf32>,
    %c1_i32 = arith.constant 1 : i32
    %177 = arith.cmpi eq, %arg1, %c1_i32 : i32
    %178 = arith.extui %177 : i1 to i32
    %c0_i32_73 = arith.constant 0 : i32
    %179 = arith.cmpi ne, %178, %c0_i32_73 : i32
    scf.if %179 {
      %c0_74 = arith.constant 0 : index
      %c0_75 = arith.constant 0 : index
      %c0_76 = arith.constant 0 : index
      %180 = vector.load %arg14[%c0_74, %c0_75, %c0_76] : memref<1x8x32xf32, #tpu.memory_space<vmem>>, vector<1x8x32xf32>
      %181 = vector.shape_cast %180 : vector<1x8x32xf32> to vector<8x32xf32>
      %182 = vector.shape_cast %175 : vector<8x32xf32> to vector<1x8x32xf32>
      tpu.vector_store %arg14[%c0_74, %c0_75, %c0_76], %182 {strides = array<i32>} : memref<1x8x32xf32, #tpu.memory_space<vmem>>, vector<1x8x32xf32>,
    } else {
    }
    return
  }
  func.func @transform_0(%arg0: i32, %arg1: i32) -> (i32, i32, i32) {
    %c0_i32 = arith.constant 0 : i32
    %c0_i32_0 = arith.constant 0 : i32
    %c0_i32_1 = arith.constant 0 : i32
    return %arg0, %c0_i32, %c0_i32_0 : i32, i32, i32
  }
  func.func @transform_1(%arg0: i32, %arg1: i32) -> (i32, i32, i32) {
    %c0_i32 = arith.constant 0 : i32
    %c0_i32_0 = arith.constant 0 : i32
    %c0_i32_1 = arith.constant 0 : i32
    return %arg0, %c0_i32, %c0_i32_0 : i32, i32, i32
  }
  func.func @transform_2(%arg0: i32, %arg1: i32) -> (i32, i32, i32) {
    %c0_i32 = arith.constant 0 : i32
    %c0_i32_0 = arith.constant 0 : i32
    %c0_i32_1 = arith.constant 0 : i32
    return %arg0, %c0_i32, %c0_i32_0 : i32, i32, i32
  }
  func.func @transform_3(%arg0: i32, %arg1: i32) -> (i32, i32, i32) {
    %c0_i32 = arith.constant 0 : i32
    %c0_i32_0 = arith.constant 0 : i32
    %c0_i32_1 = arith.constant 0 : i32
    return %arg0, %c0_i32, %c0_i32_0 : i32, i32, i32
  }
  func.func @transform_4(%arg0: i32, %arg1: i32) -> (i32, i32, i32) {
    %c0_i32 = arith.constant 0 : i32
    %c0_i32_0 = arith.constant 0 : i32
    %c0_i32_1 = arith.constant 0 : i32
    return %arg1, %c0_i32, %c0_i32_0 : i32, i32, i32
  }
  func.func @transform_5(%arg0: i32, %arg1: i32) -> (i32, i32, i32) {
    %c0_i32 = arith.constant 0 : i32
    %c0_i32_0 = arith.constant 0 : i32
    %c0_i32_1 = arith.constant 0 : i32
    return %arg1, %c0_i32, %c0_i32_0 : i32, i32, i32
  }
  func.func @transform_6(%arg0: i32, %arg1: i32) -> (i32, i32) {
    %c0_i32 = arith.constant 0 : i32
    %c0_i32_0 = arith.constant 0 : i32
    %c0_i32_1 = arith.constant 0 : i32
    return %c0_i32, %c0_i32_0 : i32, i32
  }
  func.func @transform_7(%arg0: i32, %arg1: i32) -> (i32, i32) {
    %c0_i32 = arith.constant 0 : i32
    %c0_i32_0 = arith.constant 0 : i32
    %c0_i32_1 = arith.constant 0 : i32
    return %c0_i32, %c0_i32_0 : i32, i32
  }
  func.func @transform_8(%arg0: i32, %arg1: i32) -> (i32, i32) {
    %c0_i32 = arith.constant 0 : i32
    %c0_i32_0 = arith.constant 0 : i32
    %c0_i32_1 = arith.constant 0 : i32
    return %c0_i32, %c0_i32_0 : i32, i32
  }
  func.func @transform_9(%arg0: i32, %arg1: i32) -> (i32, i32) {
    %c0_i32 = arith.constant 0 : i32
    %c0_i32_0 = arith.constant 0 : i32
    %c0_i32_1 = arith.constant 0 : i32
    return %c0_i32, %c0_i32_0 : i32, i32
  }
  func.func @transform_10(%arg0: i32, %arg1: i32) -> (i32, i32) {
    %c0_i32 = arith.constant 0 : i32
    %c0_i32_0 = arith.constant 0 : i32
    %c0_i32_1 = arith.constant 0 : i32
    return %c0_i32, %c0_i32_0 : i32, i32
  }
  func.func @transform_11(%arg0: i32, %arg1: i32) -> (i32, i32) {
    %c0_i32 = arith.constant 0 : i32
    %c0_i32_0 = arith.constant 0 : i32
    %c0_i32_1 = arith.constant 0 : i32
    return %c0_i32, %c0_i32_0 : i32, i32
  }
  func.func @transform_12(%arg0: i32, %arg1: i32) -> (i32, i32, i32) {
    %c0_i32 = arith.constant 0 : i32
    %c0_i32_0 = arith.constant 0 : i32
    %c0_i32_1 = arith.constant 0 : i32
    return %arg0, %c0_i32, %c0_i32_0 : i32, i32, i32
  }
}

</mosaic_0001>

<llo_original>
// kernel: tpu_custom_call.1
$region0: #{tpu_custom_call.1}
  #allocation0 [shape = 'u32[]', space=smem, size = 0x4, offset = 0x4, fixed_abs, tag = 'smem constant byte address 0x4 - core index']
  #allocation1 [shape = 'u32[144,128]{1,0:T(1,128)}', space=vmem, size = 0x12000, scoped, tag = 'internal scratch']
  #allocation2 [shape = 'f32[8,32]{1,0:T(8,128)}', space=vmem, size = 0x1000, scoped, tag = 'scratch operand']
  %s0 = inlined_call_operand.hbm [shape: f32[2,8,32], index: 0, kind: input, shape index: {}]
  %s1 = inlined_call_operand.hbm [shape: f32[2,8,32], index: 1, kind: input, shape index: {}]
  %s2 = inlined_call_operand.vmem [shape: f32[2,8,1], index: 2, kind: input, shape index: {}]
  %s3 = inlined_call_operand.hbm [shape: f32[2,1,8], index: 3, kind: input, shape index: {}]
  %s4 = inlined_call_operand.vmem [shape: f32[2,32,96], index: 4, kind: input, shape index: {}]
  %s5 = inlined_call_operand.vmem [shape: f32[2,32,96], index: 5, kind: input, shape index: {}]
  %s6 = inlined_call_operand.hbm [shape: f32[32,32], index: 6, kind: input, shape index: {}]
  %s7 = inlined_call_operand.hbm [shape: f32[32,32], index: 7, kind: input, shape index: {}]
  %s8 = inlined_call_operand.hbm [shape: f32[32,64], index: 8, kind: input, shape index: {}]
  %s9 = inlined_call_operand.vmem [shape: f32[1,64], index: 9, kind: input, shape index: {}]
  %s10 = inlined_call_operand.vmem [shape: f32[64,32], index: 10, kind: input, shape index: {}]
  %s11 = inlined_call_operand.vmem [shape: f32[1,32], index: 11, kind: input, shape index: {}]
  %s12 = inlined_call_operand.hbm [shape: f32[2,8,32], index: 12, kind: output, shape index: {}]
  %s13 = sld [smem:[#allocation0]]
  $region113: #{tpu_custom_call.1} parent=0
    _
  %s15 = ssub.s32 1, %s13
  %s16 = scalar_select 0, %s15, %s13
  $region1: #{tpu_custom_call.1} parent=0
    #allocation3 [shape = 'u8[8192]{0}', space=vmem, size = 0x2000, scoped, tag = 'input window, operand 0']
    #allocation4 [shape = 's32[2]{0}', space=sflag, size = 0x8, scoped, tag = 'scoped memory for tpu_custom_call.1']
    #allocation5 [shape = 's32[2]{0}', space=sflag, size = 0x8, scoped, tag = 'scoped memory for tpu_custom_call.1']
    #allocation6 [shape = 'u8[8192]{0}', space=vmem, size = 0x2000, scoped, tag = 'input window, operand 1']
    #allocation7 [shape = 's32[2]{0}', space=sflag, size = 0x8, scoped, tag = 'scoped memory for tpu_custom_call.1']
    #allocation8 [shape = 'u8[1024]{0}', space=vmem, size = 0x400, scoped, tag = 'input window, operand 3']
    #allocation9 [shape = 'u8[16384]{0}', space=vmem, size = 0x4000, scoped, tag = 'input window, operand 6, single buffered']
    #allocation10 [shape = 's32[1]{0}', space=sflag, size = 0x4, scoped, tag = 'scoped memory for tpu_custom_call.1']
    #allocation11 [shape = 'u8[16384]{0}', space=vmem, size = 0x4000, scoped, tag = 'input window, operand 7, single buffered']
    #allocation12 [shape = 'u8[16384]{0}', space=vmem, size = 0x4000, scoped, tag = 'input window, operand 8, single buffered']
    #allocation13 [shape = 's32[1]{0}', space=sflag, size = 0x4, scoped, tag = 'scoped memory for tpu_custom_call.1']
    #allocation14 [shape = 'u8[8192]{0}', space=vmem, size = 0x2000, scoped, tag = 'output window, operand 0']
    %17 = vsyncpa [#allocation4], 0
    %s18 = scalar_lea.sflag [#allocation4], 1
    %19 = vsyncpa %s18, 0
    %20 = vsyncpa [#allocation7], 0
    %s21 = scalar_lea.sflag [#allocation7], 1
    %22 = vsyncpa %s21, 0
    %23 = vsyncpa [#allocation10], 0
    %24 = vsyncpa [#allocation13], 0
    %25 = vsyncpa [#allocation5], 0
    %s26 = scalar_lea.sflag [#allocation5], 1
    %27 = vsyncpa %s26, 0
    loop: start=0, step=1, limit=6
    $region2: #{tpu_custom_call.1} parent=1 // loop_pre_header
      _
    $region3: #{tpu_custom_call.1} parent=1 // loop_header
      %s29 = sphi 0, %s33
      %p30 = scmp.ge.s32.totalorder %s29, 6
      %s36 = sphi 0, %s48
      %s37 = sphi 0, %s44
      %s38 = sphi 0, %s36
      %s39 = sphi 0, %s37
      %s40 = sphi 0, %s38
      %s41 = sphi 0, %s39
      %s51 = sphi 0, %s53
      %s54 = sphi 0, %s51
      %s55 = sphi 0, %s54
      %s71 = sphi 0, %s55
      %s77 = sphi 0, %s79
      %s80 = sphi 0, %s77
      %s81 = sphi 0, %s80
      %s97 = sphi 0, %s81
      %s103 = sphi 0, %s105
      %s106 = sphi 0, %s103
      %s107 = sphi 0, %s106
      %s123 = sphi 0, %s107
      %s129 = sphi 0, %s131
      %s132 = sphi 0, %s129
      %s133 = sphi 0, %s132
      %s149 = sphi 0, %s133
      %s155 = sphi 0, %s157
      %s158 = sphi 0, %s155
      %s159 = sphi 0, %s158
      %s175 = sphi 0, %s159
      %s181 = sphi 0, %s183
      %s184 = sphi 0, %s181
      %s185 = sphi 0, %s184
      %s201 = sphi 0, %s185
      %s205 = sphi 0, %s205
      %s207 = sphi 0, %s205
      %s208 = sphi 0, %s207
      %s222 = sphi 0, %s208
      %s226 = sphi 0, %s226
      %s228 = sphi 0, %s226
      %s229 = sphi 0, %s228
      %s243 = sphi 0, %s229
      %s247 = sphi 0, %s247
      %s249 = sphi 0, %s247
      %s250 = sphi 0, %s249
      %s264 = sphi 0, %s250
      %s268 = sphi 0, %s268
      %s270 = sphi 0, %s268
      %s271 = sphi 0, %s270
      %s285 = sphi 0, %s271
      %s289 = sphi 0, %s289
      %s291 = sphi 0, %s289
      %s292 = sphi 0, %s291
      %s306 = sphi 0, %s292
      %s310 = sphi 0, %s310
      %s312 = sphi 0, %s310
      %s313 = sphi 0, %s312
      %s327 = sphi 0, %s313
      %s333 = sphi 0, %s335
      %s336 = sphi 0, %s333
      %s337 = sphi 0, %s336
      %s353 = sphi 0, %s337
    $region4: #{tpu_custom_call.1} parent=1 // loop_header_branch
      %32 = sbr.rel (%p30) target = $region8
    $region5: #{tpu_custom_call.1} parent=1 // loop_body
      %s34 = ssub.s32 %s29, 1
      %s35 = ssub.s32 %s29, 2
      %s42 = sadd.s32 1, %s37
      %p43 = scmp.ge.s32.totalorder %s42, 2
      %s44 = scalar_select %p43, 0, %s42
      %s45 = sadd.s32 1, %s36
      %s46 = scalar_select %p43, %s45, %s36
      %p47 = scmp.ge.s32.totalorder %s46, 2
      %s48 = scalar_select %p47, 0, %s46
      %s49 = ssub.s32 %s36, %s48
      %p50 = scmp.eq.s32.totalorder %s49, 0
      %s52 = sadd.s32 %s51, 1
      %s53 = scalar_select %p50, %s51, %s52
      %p56 = pneg %p50
      %p57 = scmp.eq.s32.totalorder %s29, 3
      %p58 = por %p56, %p57
      %p59 = scmp.ne.s32.totalorder %s51, %s54
      %p60 = scmp.eq.s32.totalorder %s29, 0
      %p61 = por %p59, %p60
      %p62 = scmp.ne.s32.totalorder %s51, %s54
      %p63 = scmp.eq.s32.totalorder %s34, 3
      %p64 = por %p62, %p63
      %p65 = scmp.ne.s32.totalorder %s54, %s55
      %p66 = scmp.eq.s32.totalorder %s34, 0
      %p67 = por %p65, %p66
      %p68 = scmp.ne.s32.totalorder %s54, %s55
      %p69 = scmp.eq.s32.totalorder %s35, 3
      %p70 = por %p68, %p69
      %p72 = scmp.ne.s32.totalorder %s55, %s71
      %p73 = scmp.eq.s32.totalorder %s35, 0
      %p74 = por %p72, %p73
      %s75 = ssub.s32 %s36, %s48
      %p76 = scmp.eq.s32.totalorder %s75, 0
      %s78 = sadd.s32 %s77, 1
      %s79 = scalar_select %p76, %s77, %s78
      %p82 = pneg %p76
      %p83 = scmp.eq.s32.totalorder %s29, 3
      %p84 = por %p82, %p83
      %p85 = scmp.ne.s32.totalorder %s77, %s80
      %p86 = scmp.eq.s32.totalorder %s29, 0
      %p87 = por %p85, %p86
      %p88 = scmp.ne.s32.totalorder %s77, %s80
      %p89 = scmp.eq.s32.totalorder %s34, 3
      %p90 = por %p88, %p89
      %p91 = scmp.ne.s32.totalorder %s80, %s81
      %p92 = scmp.eq.s32.totalorder %s34, 0
      %p93 = por %p91, %p92
      %p94 = scmp.ne.s32.totalorder %s80, %s81
      %p95 = scmp.eq.s32.totalorder %s35, 3
      %p96 = por %p94, %p95
      %p98 = scmp.ne.s32.totalorder %s81, %s97
      %p99 = scmp.eq.s32.totalorder %s35, 0
      %p100 = por %p98, %p99
      %s101 = ssub.s32 %s36, %s48
      %p102 = scmp.eq.s32.totalorder %s101, 0
      %s104 = sadd.s32 %s103, 1
      %s105 = scalar_select %p102, %s103, %s104
      %p108 = pneg %p102
      %p109 = scmp.eq.s32.totalorder %s29, 3
      %p110 = por %p108, %p109
      %p111 = scmp.ne.s32.totalorder %s103, %s106
      %p112 = scmp.eq.s32.totalorder %s29, 0
      %p113 = por %p111, %p112
      %p114 = scmp.ne.s32.totalorder %s103, %s106
      %p115 = scmp.eq.s32.totalorder %s34, 3
      %p116 = por %p114, %p115
      %p117 = scmp.ne.s32.totalorder %s106, %s107
      %p118 = scmp.eq.s32.totalorder %s34, 0
      %p119 = por %p117, %p118
      %p120 = scmp.ne.s32.totalorder %s106, %s107
      %p121 = scmp.eq.s32.totalorder %s35, 3
      %p122 = por %p120, %p121
      %p124 = scmp.ne.s32.totalorder %s107, %s123
      %p125 = scmp.eq.s32.totalorder %s35, 0
      %p126 = por %p124, %p125
      %s127 = ssub.s32 %s36, %s48
      %p128 = scmp.eq.s32.totalorder %s127, 0
      %s130 = sadd.s32 %s129, 1
      %s131 = scalar_select %p128, %s129, %s130
      %p134 = pneg %p128
      %p135 = scmp.eq.s32.totalorder %s29, 3
      %p136 = por %p134, %p135
      %p137 = scmp.ne.s32.totalorder %s129, %s132
      %p138 = scmp.eq.s32.totalorder %s29, 0
      %p139 = por %p137, %p138
      %p140 = scmp.ne.s32.totalorder %s129, %s132
      %p141 = scmp.eq.s32.totalorder %s34, 3
      %p142 = por %p140, %p141
      %p143 = scmp.ne.s32.totalorder %s132, %s133
      %p144 = scmp.eq.s32.totalorder %s34, 0
      %p145 = por %p143, %p144
      %p146 = scmp.ne.s32.totalorder %s132, %s133
      %p147 = scmp.eq.s32.totalorder %s35, 3
      %p148 = por %p146, %p147
      %p150 = scmp.ne.s32.totalorder %s133, %s149
      %p151 = scmp.eq.s32.totalorder %s35, 0
      %p152 = por %p150, %p151
      %s153 = ssub.s32 %s37, %s44
      %p154 = scmp.eq.s32.totalorder %s153, 0
      %s156 = sadd.s32 %s155, 1
      %s157 = scalar_select %p154, %s155, %s156
      %p160 = pneg %p154
      %p161 = scmp.eq.s32.totalorder %s29, 3
      %p162 = por %p160, %p161
      %p163 = scmp.ne.s32.totalorder %s155, %s158
      %p164 = scmp.eq.s32.totalorder %s29, 0
      %p165 = por %p163, %p164
      %p166 = scmp.ne.s32.totalorder %s155, %s158
      %p167 = scmp.eq.s32.totalorder %s34, 3
      %p168 = por %p166, %p167
      %p169 = scmp.ne.s32.totalorder %s158, %s159
      %p170 = scmp.eq.s32.totalorder %s34, 0
      %p171 = por %p169, %p170
      %p172 = scmp.ne.s32.totalorder %s158, %s159
      %p173 = scmp.eq.s32.totalorder %s35, 3
      %p174 = por %p172, %p173
      %p176 = scmp.ne.s32.totalorder %s159, %s175
      %p177 = scmp.eq.s32.totalorder %s35, 0
      %p178 = por %p176, %p177
      %s179 = ssub.s32 %s37, %s44
      %p180 = scmp.eq.s32.totalorder %s179, 0
      %s182 = sadd.s32 %s181, 1
      %s183 = scalar_select %p180, %s181, %s182
      %p186 = pneg %p180
      %p187 = scmp.eq.s32.totalorder %s29, 3
      %p188 = por %p186, %p187
      %p189 = scmp.ne.s32.totalorder %s181, %s184
      %p190 = scmp.eq.s32.totalorder %s29, 0
      %p191 = por %p189, %p190
      %p192 = scmp.ne.s32.totalorder %s181, %s184
      %p193 = scmp.eq.s32.totalorder %s34, 3
      %p194 = por %p192, %p193
      %p195 = scmp.ne.s32.totalorder %s184, %s185
      %p196 = scmp.eq.s32.totalorder %s34, 0
      %p197 = por %p195, %p196
      %p198 = scmp.ne.s32.totalorder %s184, %s185
      %p199 = scmp.eq.s32.totalorder %s35, 3
      %p200 = por %p198, %p199
      %p202 = scmp.ne.s32.totalorder %s185, %s201
      %p203 = scmp.eq.s32.totalorder %s35, 0
      %p204 = por %p202, %p203
      %s206 = sadd.s32 %s205, 1
      %p209 = scmp.eq.s32.totalorder %s29, 3
      %p210 = scmp.ne.s32.totalorder %s205, %s207
      %p211 = scmp.eq.s32.totalorder %s29, 0
      %p212 = por %p210, %p211
      %p213 = scmp.ne.s32.totalorder %s205, %s207
      %p214 = scmp.eq.s32.totalorder %s34, 3
      %p215 = por %p213, %p214
      %p216 = scmp.ne.s32.totalorder %s207, %s208
      %p217 = scmp.eq.s32.totalorder %s34, 0
      %p218 = por %p216, %p217
      %p219 = scmp.ne.s32.totalorder %s207, %s208
      %p220 = scmp.eq.s32.totalorder %s35, 3
      %p221 = por %p219, %p220
      %p223 = scmp.ne.s32.totalorder %s208, %s222
      %p224 = scmp.eq.s32.totalorder %s35, 0
      %p225 = por %p223, %p224
      %s227 = sadd.s32 %s226, 1
      %p230 = scmp.eq.s32.totalorder %s29, 3
      %p231 = scmp.ne.s32.totalorder %s226, %s228
      %p232 = scmp.eq.s32.totalorder %s29, 0
      %p233 = por %p231, %p232
      %p234 = scmp.ne.s32.totalorder %s226, %s228
      %p235 = scmp.eq.s32.totalorder %s34, 3
      %p236 = por %p234, %p235
      %p237 = scmp.ne.s32.totalorder %s228, %s229
      %p238 = scmp.eq.s32.totalorder %s34, 0
      %p239 = por %p237, %p238
      %p240 = scmp.ne.s32.totalorder %s228, %s229
      %p241 = scmp.eq.s32.totalorder %s35, 3
      %p242 = por %p240, %p241
      %p244 = scmp.ne.s32.totalorder %s229, %s243
      %p245 = scmp.eq.s32.totalorder %s35, 0
      %p246 = por %p244, %p245
      %s248 = sadd.s32 %s247, 1
      %p251 = scmp.eq.s32.totalorder %s29, 3
      %p252 = scmp.ne.s32.totalorder %s247, %s249
      %p253 = scmp.eq.s32.totalorder %s29, 0
      %p254 = por %p252, %p253
      %p255 = scmp.ne.s32.totalorder %s247, %s249
      %p256 = scmp.eq.s32.totalorder %s34, 3
      %p257 = por %p255, %p256
      %p258 = scmp.ne.s32.totalorder %s249, %s250
      %p259 = scmp.eq.s32.totalorder %s34, 0
      %p260 = por %p258, %p259
      %p261 = scmp.ne.s32.totalorder %s249, %s250
      %p262 = scmp.eq.s32.totalorder %s35, 3
      %p263 = por %p261, %p262
      %p265 = scmp.ne.s32.totalorder %s250, %s264
      %p266 = scmp.eq.s32.totalorder %s35, 0
      %p267 = por %p265, %p266
      %s269 = sadd.s32 %s268, 1
      %p272 = scmp.eq.s32.totalorder %s29, 3
      %p273 = scmp.ne.s32.totalorder %s268, %s270
      %p274 = scmp.eq.s32.totalorder %s29, 0
      %p275 = por %p273, %p274
      %p276 = scmp.ne.s32.totalorder %s268, %s270
      %p277 = scmp.eq.s32.totalorder %s34, 3
      %p278 = por %p276, %p277
      %p279 = scmp.ne.s32.totalorder %s270, %s271
      %p280 = scmp.eq.s32.totalorder %s34, 0
      %p281 = por %p279, %p280
      %p282 = scmp.ne.s32.totalorder %s270, %s271
      %p283 = scmp.eq.s32.totalorder %s35, 3
      %p284 = por %p282, %p283
      %p286 = scmp.ne.s32.totalorder %s271, %s285
      %p287 = scmp.eq.s32.totalorder %s35, 0
      %p288 = por %p286, %p287
      %s290 = sadd.s32 %s289, 1
      %p293 = scmp.eq.s32.totalorder %s29, 3
      %p294 = scmp.ne.s32.totalorder %s289, %s291
      %p295 = scmp.eq.s32.totalorder %s29, 0
      %p296 = por %p294, %p295
      %p297 = scmp.ne.s32.totalorder %s289, %s291
      %p298 = scmp.eq.s32.totalorder %s34, 3
      %p299 = por %p297, %p298
      %p300 = scmp.ne.s32.totalorder %s291, %s292
      %p301 = scmp.eq.s32.totalorder %s34, 0
      %p302 = por %p300, %p301
      %p303 = scmp.ne.s32.totalorder %s291, %s292
      %p304 = scmp.eq.s32.totalorder %s35, 3
      %p305 = por %p303, %p304
      %p307 = scmp.ne.s32.totalorder %s292, %s306
      %p308 = scmp.eq.s32.totalorder %s35, 0
      %p309 = por %p307, %p308
      %s311 = sadd.s32 %s310, 1
      %p314 = scmp.eq.s32.totalorder %s29, 3
      %p315 = scmp.ne.s32.totalorder %s310, %s312
      %p316 = scmp.eq.s32.totalorder %s29, 0
      %p317 = por %p315, %p316
      %p318 = scmp.ne.s32.totalorder %s310, %s312
      %p319 = scmp.eq.s32.totalorder %s34, 3
      %p320 = por %p318, %p319
      %p321 = scmp.ne.s32.totalorder %s312, %s313
      %p322 = scmp.eq.s32.totalorder %s34, 0
      %p323 = por %p321, %p322
      %p324 = scmp.ne.s32.totalorder %s312, %s313
      %p325 = scmp.eq.s32.totalorder %s35, 3
      %p326 = por %p324, %p325
      %p328 = scmp.ne.s32.totalorder %s313, %s327
      %p329 = scmp.eq.s32.totalorder %s35, 0
      %p330 = por %p328, %p329
      %s331 = ssub.s32 %s36, %s48
      %p332 = scmp.eq.s32.totalorder %s331, 0
      %s334 = sadd.s32 %s333, 1
      %s335 = scalar_select %p332, %s333, %s334
      %p338 = pneg %p332
      %p339 = scmp.eq.s32.totalorder %s29, 3
      %p340 = por %p338, %p339
      %p341 = scmp.ne.s32.totalorder %s333, %s336
      %p342 = scmp.eq.s32.totalorder %s29, 0
      %p343 = por %p341, %p342
      %p344 = scmp.ne.s32.totalorder %s333, %s336
      %p345 = scmp.eq.s32.totalorder %s34, 3
      %p346 = por %p344, %p345
      %p347 = scmp.ne.s32.totalorder %s336, %s337
      %p348 = scmp.eq.s32.totalorder %s34, 0
      %p349 = por %p347, %p348
      %p350 = scmp.ne.s32.totalorder %s336, %s337
      %p351 = scmp.eq.s32.totalorder %s35, 3
      %p352 = por %p350, %p351
      %p354 = scmp.ne.s32.totalorder %s337, %s353
      %p355 = scmp.eq.s32.totalorder %s35, 0
      %p356 = por %p354, %p355
      %p357 = scmp.le.s32.totalorder 1, %s29
      %p358 = scmp.lt.s32.totalorder %s29, 5
      %p359 = pnand %p357, %p358
      %p360 = pneg %p359
      // Predicated region
      $region9: #{tpu_custom_call.1} parent=5 // pred_check
        _
      $region10: #{tpu_custom_call.1} parent=5 // pred_check_branch
        %362 = sbr.rel (%p359) target = $region12
      $region11: #{tpu_custom_call.1} parent=5 // pred_region
        %s363 = ssub.s32 %s29, 1
        // Predicated region
        $region13: #{tpu_custom_call.1} parent=11 // pred_check
          %p364 = pneg %p218
        $region14: #{tpu_custom_call.1} parent=11 // pred_check_branch
          %366 = sbr.rel (%p364) target = $region16
        $region15: #{tpu_custom_call.1} parent=11 // pred_region
          %s368 = ssub.s32 512, 512
          %369 = vsyncadd [#allocation10], %s368
          %s370 = sshll.u32 [#allocation9], 4
          %s371 = int_to_ptr.vmem [resolvable:$true] %s370
          %376 = dma.hbm_to_vmem [thread:$0]  %s6, 512, %s371, [#allocation10], 128, 128, 8
        $region16: #{tpu_custom_call.1} parent=11 // pred_fallthru
          _
        // Predicated region
        $region17: #{tpu_custom_call.1} parent=11 // pred_check
          %p377 = pneg %p239
        $region18: #{tpu_custom_call.1} parent=11 // pred_check_branch
          %379 = sbr.rel (%p377) target = $region20
        $region19: #{tpu_custom_call.1} parent=11 // pred_region
          %s381 = ssub.s32 512, 512
          %382 = vsyncadd [#allocation10], %s381
          %s383 = sshll.u32 [#allocation11], 4
          %s384 = int_to_ptr.vmem [resolvable:$true] %s383
          %389 = dma.hbm_to_vmem [thread:$0]  %s7, 512, %s384, [#allocation10], 128, 128, 8
        $region20: #{tpu_custom_call.1} parent=11 // pred_fallthru
          _
        // Predicated region
        $region21: #{tpu_custom_call.1} parent=11 // pred_check
          %p390 = pneg %p260
        $region22: #{tpu_custom_call.1} parent=11 // pred_check_branch
          %392 = sbr.rel (%p390) target = $region24
        $region23: #{tpu_custom_call.1} parent=11 // pred_region
          %s394 = ssub.s32 512, 512
          %395 = vsyncadd [#allocation13], %s394
          %s396 = sshll.u32 [#allocation12], 4
          %s397 = int_to_ptr.vmem [resolvable:$true] %s396
          %402 = dma.hbm_to_vmem [thread:$0]  %s8, 512, %s397, [#allocation13], 128, 128, 8
        $region24: #{tpu_custom_call.1} parent=11 // pred_fallthru
          _
        // Predicated region
        $region25: #{tpu_custom_call.1} parent=11 // pred_check
          %p403 = pneg %p281
        $region26: #{tpu_custom_call.1} parent=11 // pred_check_branch
          %405 = sbr.rel (%p403) target = $region28
        $region27: #{tpu_custom_call.1} parent=11 // pred_region
          _
        $region28: #{tpu_custom_call.1} parent=11 // pred_fallthru
          _
        // Predicated region
        $region29: #{tpu_custom_call.1} parent=11 // pred_check
          %p406 = pneg %p302
        $region30: #{tpu_custom_call.1} parent=11 // pred_check_branch
          %408 = sbr.rel (%p406) target = $region32
        $region31: #{tpu_custom_call.1} parent=11 // pred_region
          _
        $region32: #{tpu_custom_call.1} parent=11 // pred_fallthru
          _
        // Predicated region
        $region33: #{tpu_custom_call.1} parent=11 // pred_check
          %p409 = pneg %p323
        $region34: #{tpu_custom_call.1} parent=11 // pred_check_branch
          %411 = sbr.rel (%p409) target = $region36
        $region35: #{tpu_custom_call.1} parent=11 // pred_region
          _
        $region36: #{tpu_custom_call.1} parent=11 // pred_fallthru
          _
      $region12: #{tpu_custom_call.1} parent=5 // pred_fallthru
        _
      %p412 = scmp.lt.s32.totalorder %s29, 4
      // Predicated region
      $region37: #{tpu_custom_call.1} parent=5 // pred_check
        %p413 = pneg %p412
      $region38: #{tpu_custom_call.1} parent=5 // pred_check_branch
        %415 = sbr.rel (%p413) target = $region40
      $region39: #{tpu_custom_call.1} parent=5 // pred_region
        // Predicated region
        $region41: #{tpu_custom_call.1} parent=39 // pred_check
          %p416 = pneg %p61
        $region42: #{tpu_custom_call.1} parent=39 // pred_check_branch
          %418 = sbr.rel (%p416) target = $region44
        $region43: #{tpu_custom_call.1} parent=39 // pred_region
          %s419 = sand.u32 %s51, 1
          %s420 = scalar_lea.sflag [#allocation4], %s419
          %s421 = sand.u32 %s51, 1
          %s422 = smul.addr %s421, 8
          %s423 = scalar_lea.vmem [#allocation3], %s422
          %s425 = ssub.s32 128, 128
          %426 = vsyncadd %s420, %s425
          %s427 = smul.addr %s36, 128
          %s428 = scalar_lea.hbm %s0, %s427
          %s430 = sshll.u32 %s423, 4
          %s431 = int_to_ptr.vmem [resolvable:$true] %s430
          %433 = dma.hbm_to_vmem [thread:$0]  %s428, 128, %s431, %s420
        $region44: #{tpu_custom_call.1} parent=39 // pred_fallthru
          _
        // Predicated region
        $region45: #{tpu_custom_call.1} parent=39 // pred_check
          %p434 = pneg %p87
        $region46: #{tpu_custom_call.1} parent=39 // pred_check_branch
          %436 = sbr.rel (%p434) target = $region48
        $region47: #{tpu_custom_call.1} parent=39 // pred_region
          %s437 = sand.u32 %s29, 1
          %s438 = scalar_lea.sflag [#allocation7], %s437
          %s439 = sand.u32 %s77, 1
          %s440 = smul.addr %s439, 8
          %s441 = scalar_lea.vmem [#allocation6], %s440
          %s443 = ssub.s32 128, 128
          %444 = vsyncadd %s438, %s443
          %s445 = smul.addr %s36, 128
          %s446 = scalar_lea.hbm %s1, %s445
          %s448 = sshll.u32 %s441, 4
          %s449 = int_to_ptr.vmem [resolvable:$true] %s448
          %451 = dma.hbm_to_vmem [thread:$0]  %s446, 128, %s449, %s438
        $region48: #{tpu_custom_call.1} parent=39 // pred_fallthru
          _
        // Predicated region
        $region49: #{tpu_custom_call.1} parent=39 // pred_check
          %p452 = pneg %p113
        $region50: #{tpu_custom_call.1} parent=39 // pred_check_branch
          %454 = sbr.rel (%p452) target = $region52
        $region51: #{tpu_custom_call.1} parent=39 // pred_region
          %p455 = scmp.lt.s32.totalorder %s36, 1
          %s456 = scalar_select %p455, %s36, 1
          %s457 = smul.addr %s456, 8
          %s458 = scalar_lea.vmem %s2, %s457
        $region52: #{tpu_custom_call.1} parent=39 // pred_fallthru
          _
        // Predicated region
        $region53: #{tpu_custom_call.1} parent=39 // pred_check
          %p459 = pneg %p139
        $region54: #{tpu_custom_call.1} parent=39 // pred_check_branch
          %461 = sbr.rel (%p459) target = $region56
        $region55: #{tpu_custom_call.1} parent=39 // pred_region
          %s462 = sand.u32 %s29, 1
          %s463 = scalar_lea.sflag [#allocation7], %s462
          %s464 = sand.u32 %s129, 1
          %s465 = scalar_lea.vmem [#allocation8], %s464
          %s467 = ssub.s32 16, 16
          %468 = vsyncadd %s463, %s467
          %s469 = smul.addr %s36, 16
          %s470 = scalar_lea.hbm %s3, %s469
          %s472 = sshll.u32 %s465, 4
          %s473 = int_to_ptr.vmem [resolvable:$true] %s472
          %475 = dma.hbm_to_vmem [thread:$0]  %s470, 16, %s473, %s463
        $region56: #{tpu_custom_call.1} parent=39 // pred_fallthru
          _
        // Predicated region
        $region57: #{tpu_custom_call.1} parent=39 // pred_check
          %p476 = pneg %p165
        $region58: #{tpu_custom_call.1} parent=39 // pred_check_branch
          %478 = sbr.rel (%p476) target = $region60
        $region59: #{tpu_custom_call.1} parent=39 // pred_region
          %p479 = scmp.lt.s32.totalorder %s37, 1
          %s480 = scalar_select %p479, %s37, 1
          %s481 = smul.addr %s480, 4
          %s482 = smul.addr %s481, 8
          %s483 = scalar_lea.vmem %s4, %s482
        $region60: #{tpu_custom_call.1} parent=39 // pred_fallthru
          _
        // Predicated region
        $region61: #{tpu_custom_call.1} parent=39 // pred_check
          %p484 = pneg %p191
        $region62: #{tpu_custom_call.1} parent=39 // pred_check_branch
          %486 = sbr.rel (%p484) target = $region64
        $region63: #{tpu_custom_call.1} parent=39 // pred_region
          %p487 = scmp.lt.s32.totalorder %s37, 1
          %s488 = scalar_select %p487, %s37, 1
          %s489 = smul.addr %s488, 4
          %s490 = smul.addr %s489, 8
          %s491 = scalar_lea.vmem %s5, %s490
        $region64: #{tpu_custom_call.1} parent=39 // pred_fallthru
          _
      $region40: #{tpu_custom_call.1} parent=5 // pred_fallthru
        _
      %p492 = scmp.le.s32.totalorder 1, %s29
      %p493 = scmp.lt.s32.totalorder %s29, 5
      %p494 = pnand %p492, %p493
      %p495 = pneg %p494
      // Predicated region
      $region65: #{tpu_custom_call.1} parent=5 // pred_check
        _
      $region66: #{tpu_custom_call.1} parent=5 // pred_check_branch
        %497 = sbr.rel (%p494) target = $region68
      $region67: #{tpu_custom_call.1} parent=5 // pred_region
        %s498 = ssub.s32 %s29, 1
        %s499 = sand.u32 %s54, 1
        %s500 = scalar_lea.sflag [#allocation4], %s499
        %s501 = sand.u32 %s54, 1
        %s502 = smul.addr %s501, 8
        %s503 = scalar_lea.vmem [#allocation3], %s502
        // Predicated region
        $region69: #{tpu_custom_call.1} parent=67 // pred_check
          %p504 = pneg %p67
        $region70: #{tpu_custom_call.1} parent=67 // pred_check_branch
          %506 = sbr.rel (%p504) target = $region72
        $region71: #{tpu_custom_call.1} parent=67 // pred_region
          %507 = dma.done %s500, 128
        $region72: #{tpu_custom_call.1} parent=67 // pred_fallthru
          _
        %s508 = sand.u32 %s34, 1
        %s509 = scalar_lea.sflag [#allocation7], %s508
        %s510 = sand.u32 %s80, 1
        %s511 = smul.addr %s510, 8
        %s512 = scalar_lea.vmem [#allocation6], %s511
        // Predicated region
        $region73: #{tpu_custom_call.1} parent=67 // pred_check
          %p513 = pneg %p93
        $region74: #{tpu_custom_call.1} parent=67 // pred_check_branch
          %515 = sbr.rel (%p513) target = $region76
        $region75: #{tpu_custom_call.1} parent=67 // pred_region
          %516 = dma.done %s509, 128
        $region76: #{tpu_custom_call.1} parent=67 // pred_fallthru
          _
        %s517 = sand.u32 %s34, 1
        %s518 = scalar_lea.sflag [#allocation7], %s517
        %s519 = sand.u32 %s132, 1
        %s520 = scalar_lea.vmem [#allocation8], %s519
        // Predicated region
        $region77: #{tpu_custom_call.1} parent=67 // pred_check
          %p521 = pneg %p145
        $region78: #{tpu_custom_call.1} parent=67 // pred_check_branch
          %523 = sbr.rel (%p521) target = $region80
        $region79: #{tpu_custom_call.1} parent=67 // pred_region
          %524 = dma.done %s518, 16
        $region80: #{tpu_custom_call.1} parent=67 // pred_fallthru
          _
        // Predicated region
        $region81: #{tpu_custom_call.1} parent=67 // pred_check
          %p525 = pneg %p218
        $region82: #{tpu_custom_call.1} parent=67 // pred_check_branch
          %527 = sbr.rel (%p525) target = $region84
        $region83: #{tpu_custom_call.1} parent=67 // pred_region
          %528 = dma.done [#allocation10], 512
        $region84: #{tpu_custom_call.1} parent=67 // pred_fallthru
          _
        // Predicated region
        $region85: #{tpu_custom_call.1} parent=67 // pred_check
          %p529 = pneg %p239
        $region86: #{tpu_custom_call.1} parent=67 // pred_check_branch
          %531 = sbr.rel (%p529) target = $region88
        $region87: #{tpu_custom_call.1} parent=67 // pred_region
          %532 = dma.done [#allocation10], 512
        $region88: #{tpu_custom_call.1} parent=67 // pred_fallthru
          _
        // Predicated region
        $region89: #{tpu_custom_call.1} parent=67 // pred_check
          %p533 = pneg %p260
        $region90: #{tpu_custom_call.1} parent=67 // pred_check_branch
          %535 = sbr.rel (%p533) target = $region92
        $region91: #{tpu_custom_call.1} parent=67 // pred_region
          %536 = dma.done [#allocation13], 512
        $region92: #{tpu_custom_call.1} parent=67 // pred_fallthru
          _
        %s537 = sand.u32 %s54, 1
        %s538 = scalar_lea.sflag [#allocation4], %s537
        %s539 = sand.u32 %s54, 1
        %s540 = smul.addr %s539, 8
        %s541 = scalar_lea.vmem [#allocation3], %s540
        %p542 = pneg %p67
        %p543 = pneg %p64
        %s544 = sand.u32 %s34, 1
        %s545 = scalar_lea.sflag [#allocation7], %s544
        %s546 = sand.u32 %s80, 1
        %s547 = smul.addr %s546, 8
        %s548 = scalar_lea.vmem [#allocation6], %s547
        %p549 = pneg %p93
        %p550 = pneg %p90
        %p551 = scmp.lt.s32.totalorder %s38, 1
        %s552 = scalar_select %p551, %s38, 1
        %s553 = smul.addr %s552, 8
        %s554 = scalar_lea.vmem %s2, %s553
        %p555 = pneg %p119
        %p556 = pneg %p116
        %s557 = sand.u32 %s34, 1
        %s558 = scalar_lea.sflag [#allocation7], %s557
        %s559 = sand.u32 %s132, 1
        %s560 = scalar_lea.vmem [#allocation8], %s559
        %p561 = pneg %p145
        %p562 = pneg %p142
        %p563 = scmp.lt.s32.totalorder %s39, 1
        %s564 = scalar_select %p563, %s39, 1
        %s565 = smul.addr %s564, 4
        %s566 = smul.addr %s565, 8
        %s567 = scalar_lea.vmem %s4, %s566
        %p568 = pneg %p171
        %p569 = pneg %p168
        %p570 = scmp.lt.s32.totalorder %s39, 1
        %s571 = scalar_select %p570, %s39, 1
        %s572 = smul.addr %s571, 4
        %s573 = smul.addr %s572, 8
        %s574 = scalar_lea.vmem %s5, %s573
        %p575 = pneg %p197
        %p576 = pneg %p194
        %p577 = pneg %p218
        %p578 = pneg %p215
        %p579 = pneg %p239
        %p580 = pneg %p236
        %p581 = pneg %p260
        %p582 = pneg %p257
        %p583 = pneg %p281
        %p584 = pneg %p278
        %p585 = pneg %p302
        %p586 = pneg %p299
        %p587 = pneg %p323
        %p588 = pneg %p320
        %p589 = pneg %p349
        %p590 = pneg %p346
        %s591 = sand.u32 %s336, 1
        %s592 = scalar_lea.sflag [#allocation5], %s591
        %s593 = sand.u32 %s336, 1
        %s594 = smul.addr %s593, 8
        %s595 = scalar_lea.vmem [#allocation14], %s594
        %p596 = scmp.lt.s32.totalorder %s38, 1
        %s597 = scalar_select %p596, %s38, 1
        %s598 = smul.addr %s597, 8
        %s599 = scalar_lea.vmem %s2, %s598
        %p600 = scmp.lt.s32.totalorder %s39, 1
        %s601 = scalar_select %p600, %s39, 1
        %s602 = smul.addr %s601, 4
        %s603 = smul.addr %s602, 8
        %s604 = scalar_lea.vmem %s4, %s603
        %p605 = scmp.lt.s32.totalorder %s39, 1
        %s606 = scalar_select %p605, %s39, 1
        %s607 = smul.addr %s606, 4
        %s608 = smul.addr %s607, 8
        %s609 = scalar_lea.vmem %s5, %s608
        %p610 = scmp.eq.s32.totalorder %s39, 0
        // Predicated region
        $region93: #{tpu_custom_call.1} parent=67 // pred_check
          %p611 = pneg %p610
        $region94: #{tpu_custom_call.1} parent=67 // pred_check_branch
          %613 = sbr.rel (%p611) target = $region96
        $region95: #{tpu_custom_call.1} parent=67 // pred_region
          %v614 = vld [vmem:[%s503] sm:$0xff]
          %vm615 = vcmask 261120
          %616 = vst.msk [vmem:[#allocation2] sm:$0xff] %vm615, %v614
        $region96: #{tpu_custom_call.1} parent=67 // pred_fallthru
          _
        %v617 = vld [vmem:[#allocation2] sm:$0xff]
        %v618 = vld [vmem:[%s512] sm:$0xff]
        %v619 = vld [vmem:[%s599] sm:$0xff]
        %v620 = vld [vmem:[%s520] sm:$0x1]
        %622 = vset.pattern.permute.xlu0 0
        %623 = vperm.xlu0 %622, %v619
        %v624 = vpop.permute.xlu0 %623
        %v627 = vlaneseq
        %v628 = vshrl.u32 %v627, 7
        %v629 = vsub.s32 0, %v628
        %v630 = vrot.slane %v620, %v629
        %v632 = vmul.f32 %v624, %v630
        %v633 = vlaneseq
        %v634 = vshrl.u32 %v633, 7
        %v635 = vlaneseq
        %v636 = vand.u32 %v635, 127
        %vm637 = vcmp.ge.s32.totalorder %v634, %v636
        %v638 = vsel %vm637, 1, 0
        %v639 = vcvt.s32.f32 %v638
        %v640 = vmul.f32 %v632, %v639
        %v641 = vld [vmem:[%s604] sm:$0xff]
        %v642 = vld [vmem:[%s604 + $0x8] sm:$0xff]
        %v643 = vld [vmem:[%s604 + $0x10] sm:$0xff]
        %v644 = vld [vmem:[%s604 + $0x18] sm:$0xff]
        %v645 = vld [vmem:[#allocation9] sm:$0xff]
        %v646 = vld [vmem:[#allocation9 + $0x8] sm:$0xff]
        %v647 = vld [vmem:[#allocation9 + $0x10] sm:$0xff]
        %v648 = vld [vmem:[#allocation9 + $0x18] sm:$0xff]
        %vm649 = vcmask 261120
        %v651 = vsel %vm649, %v617, 0
        %653 = vmatprep.subr.mxu0 0.0
        %654 = vmatpush1.msra.mxu0 %v641
        %655 = vmatprep.subr.mxu0 0.0
        %656 = vmatpush1.msra.mxu0 %v642
        %657 = vmatprep.subr.mxu0 0.0
        %658 = vmatpush1.msra.mxu0 %v643
        %659 = vmatprep.subr.mxu0 0.0
        %660 = vmatpush1.msra.mxu0 %v644
        %661 = vmatprep.subr.mxu0 0.0
        %662 = vmatpush1.msra.mxu0 0.0
        %663 = vmatprep.subr.mxu0 0.0
        %664 = vmatpush1.msra.mxu0 0.0
        %665 = vmatprep.subr.mxu0 0.0
        %666 = vmatpush1.msra.mxu0 0.0
        %667 = vmatprep.subr.mxu0 0.0
        %668 = vmatpush1.msra.mxu0 0.0
        %669 = vmatprep.subr.mxu0 0.0
        %670 = vmatpush1.msra.mxu0 0.0
        %671 = vmatprep.subr.mxu0 0.0
        %672 = vmatpush1.msra.mxu0 0.0
        %673 = vmatprep.subr.mxu0 0.0
        %674 = vmatpush1.msra.mxu0 0.0
        %675 = vmatprep.subr.mxu0 0.0
        %676 = vmatpush1.msra.mxu0 0.0
        %677 = vmatprep.subr.mxu0 0.0
        %678 = vmatpush1.msra.mxu0 0.0
        %679 = vmatprep.subr.mxu0 0.0
        %680 = vmatpush1.msra.mxu0 0.0
        %681 = vmatprep.subr.mxu0 0.0
        %682 = vmatpush1.msra.mxu0 0.0
        %683 = vmatprep.subr.mxu0 0.0
        %684 = vmatpush1.msra.mxu0 0.0
        %685 = vmatprep.subr.mxu0 0.0
        %686 = vmatpush1.msra.mxu0 0.0
        %687 = vmatprep.subr.mxu0 0.0
        %688 = vmatpush1.msra.mxu0 0.0
        %689 = vmatprep.subr.mxu0 0.0
        %690 = vmatpush1.msra.mxu0 0.0
        %691 = vmatprep.subr.mxu0 0.0
        %692 = vmatpush1.msra.mxu0 0.0
        %693 = vmatprep.subr.mxu0 0.0
        %694 = vmatpush1.msra.mxu0 0.0
        %695 = vmatprep.subr.mxu0 0.0
        %696 = vmatpush1.msra.mxu0 0.0
        %697 = vmatprep.subr.mxu0 0.0
        %698 = vmatpush1.msra.mxu0 0.0
        %699 = vmatprep.subr.mxu0 0.0
        %700 = vmatpush1.msra.mxu0 0.0
        %701 = vmatprep.subr.mxu0 0.0
        %702 = vmatpush1.msra.mxu0 0.0
        %703 = vmatprep.subr.mxu0 0.0
        %704 = vmatpush1.msra.mxu0 0.0
        %705 = vmatprep.subr.mxu0 0.0
        %706 = vmatpush1.msra.mxu0 0.0
        %707 = vmatprep.subr.mxu0 0.0
        %708 = vmatpush1.msra.mxu0 0.0
        %709 = vmatprep.subr.mxu0 0.0
        %710 = vmatpush1.msra.mxu0 0.0
        %711 = vmatprep.subr.mxu0 0.0
        %712 = vmatpush1.msra.mxu0 0.0
        %713 = vmatprep.subr.mxu0 0.0
        %714 = vmatpush1.msra.mxu0 0.0
        %715 = vmatprep.subr.mxu0 0.0
        %716 = vmatpush1.msra.mxu0 0.0
        %717 = vmatprep.mubr.f32.mxu0 0.0
        %718 = vmatmul.mubr.f32.gmra.mrb[0].mxu0 %v651
        %v719 = vpop.f32.mrb[0].mxu0
        %v720 = vadd.f32 0.0, %v719
        %v721 = vpop.f32.mrb[0].mxu0
        %722 = vdwg.mxu0
        %727 = vrot.lane.b32.xlu0 %v641, 64
        %v728 = vpop.permute.xlu0 %727
        %729 = vrot.lane.b32.xlu0 %v642, 64
        %v730 = vpop.permute.xlu0 %729
        %731 = vrot.lane.b32.xlu0 %v643, 64
        %v732 = vpop.permute.xlu0 %731
        %733 = vrot.lane.b32.xlu0 %v644, 64
        %v734 = vpop.permute.xlu0 %733
        %739 = vmatprep.subr.mxu0 0.0
        %740 = vmatpush1.msra.mxu0 %v728
        %741 = vmatprep.subr.mxu0 0.0
        %742 = vmatpush1.msra.mxu0 %v730
        %743 = vmatprep.subr.mxu0 0.0
        %744 = vmatpush1.msra.mxu0 %v732
        %745 = vmatprep.subr.mxu0 0.0
        %746 = vmatpush1.msra.mxu0 %v734
        %747 = vmatprep.subr.mxu0 0.0
        %748 = vmatpush1.msra.mxu0 0.0
        %749 = vmatprep.subr.mxu0 0.0
        %750 = vmatpush1.msra.mxu0 0.0
        %751 = vmatprep.subr.mxu0 0.0
        %752 = vmatpush1.msra.mxu0 0.0
        %753 = vmatprep.subr.mxu0 0.0
        %754 = vmatpush1.msra.mxu0 0.0
        %755 = vmatprep.subr.mxu0 0.0
        %756 = vmatpush1.msra.mxu0 0.0
        %757 = vmatprep.subr.mxu0 0.0
        %758 = vmatpush1.msra.mxu0 0.0
        %759 = vmatprep.subr.mxu0 0.0
        %760 = vmatpush1.msra.mxu0 0.0
        %761 = vmatprep.subr.mxu0 0.0
        %762 = vmatpush1.msra.mxu0 0.0
        %763 = vmatprep.subr.mxu0 0.0
        %764 = vmatpush1.msra.mxu0 0.0
        %765 = vmatprep.subr.mxu0 0.0
        %766 = vmatpush1.msra.mxu0 0.0
        %767 = vmatprep.subr.mxu0 0.0
        %768 = vmatpush1.msra.mxu0 0.0
        %769 = vmatprep.subr.mxu0 0.0
        %770 = vmatpush1.msra.mxu0 0.0
        %771 = vmatprep.subr.mxu0 0.0
        %772 = vmatpush1.msra.mxu0 0.0
        %773 = vmatprep.subr.mxu0 0.0
        %774 = vmatpush1.msra.mxu0 0.0
        %775 = vmatprep.subr.mxu0 0.0
        %776 = vmatpush1.msra.mxu0 0.0
        %777 = vmatprep.subr.mxu0 0.0
        %778 = vmatpush1.msra.mxu0 0.0
        %779 = vmatprep.subr.mxu0 0.0
        %780 = vmatpush1.msra.mxu0 0.0
        %781 = vmatprep.subr.mxu0 0.0
        %782 = vmatpush1.msra.mxu0 0.0
        %783 = vmatprep.subr.mxu0 0.0
        %784 = vmatpush1.msra.mxu0 0.0
        %785 = vmatprep.subr.mxu0 0.0
        %786 = vmatpush1.msra.mxu0 0.0
        %787 = vmatprep.subr.mxu0 0.0
        %788 = vmatpush1.msra.mxu0 0.0
        %789 = vmatprep.subr.mxu0 0.0
        %790 = vmatpush1.msra.mxu0 0.0
        %791 = vmatprep.subr.mxu0 0.0
        %792 = vmatpush1.msra.mxu0 0.0
        %793 = vmatprep.subr.mxu0 0.0
        %794 = vmatpush1.msra.mxu0 0.0
        %795 = vmatprep.subr.mxu0 0.0
        %796 = vmatpush1.msra.mxu0 0.0
        %797 = vmatprep.subr.mxu0 0.0
        %798 = vmatpush1.msra.mxu0 0.0
        %799 = vmatprep.subr.mxu0 0.0
        %800 = vmatpush1.msra.mxu0 0.0
        %801 = vmatprep.subr.mxu0 0.0
        %802 = vmatpush1.msra.mxu0 0.0
        %803 = vmatprep.mubr.f32.mxu0 0.0
        %804 = vmatmul.mubr.f32.gmra.mrb[0].mxu0 %v651
        %v805 = vpop.f32.mrb[0].mxu0
        %v806 = vadd.f32 0.0, %v805
        %v807 = vpop.f32.mrb[0].mxu0
        %808 = vdwg.mxu0
        %810 = vrot.lane.b32.xlu0 %v720, 96
        %v811 = vpop.permute.xlu0 %810
        %vm812 = vcmask 130048
        %v813 = vsel %vm812, %v720, 0
        %v815 = vsel %vm812, %v811, 0
        %817 = vmatprep.subr.mxu0 0.0
        %818 = vmatpush1.xpose.msra.mxu0 %v815
        %819 = vmatprep.subr.mxu0 0.0
        %820 = vmatpush1.xpose.msra.mxu0 0.0
        %821 = vmatprep.subr.mxu0 0.0
        %822 = vmatpush1.xpose.msra.mxu0 0.0
        %823 = vmatprep.subr.mxu0 0.0
        %824 = vmatpush1.xpose.msra.mxu0 0.0
        %825 = vmatprep.subr.mxu0 0.0
        %826 = vmatpush1.xpose.msra.mxu0 0.0
        %827 = vmatprep.subr.mxu0 0.0
        %828 = vmatpush1.xpose.msra.mxu0 0.0
        %829 = vmatprep.subr.mxu0 0.0
        %830 = vmatpush1.xpose.msra.mxu0 0.0
        %831 = vmatprep.subr.mxu0 0.0
        %832 = vmatpush1.xpose.msra.mxu0 0.0
        %833 = vmatprep.subr.mxu0 0.0
        %834 = vmatpush1.xpose.msra.mxu0 0.0
        %835 = vmatprep.subr.mxu0 0.0
        %836 = vmatpush1.xpose.msra.mxu0 0.0
        %837 = vmatprep.subr.mxu0 0.0
        %838 = vmatpush1.xpose.msra.mxu0 0.0
        %839 = vmatprep.subr.mxu0 0.0
        %840 = vmatpush1.xpose.msra.mxu0 0.0
        %841 = vmatprep.subr.mxu0 0.0
        %842 = vmatpush1.xpose.msra.mxu0 0.0
        %843 = vmatprep.subr.mxu0 0.0
        %844 = vmatpush1.xpose.msra.mxu0 0.0
        %845 = vmatprep.subr.mxu0 0.0
        %846 = vmatpush1.xpose.msra.mxu0 0.0
        %847 = vmatprep.subr.mxu0 0.0
        %848 = vmatpush1.xpose.msra.mxu0 0.0
        %849 = vmatprep.subr.mxu0 0.0
        %850 = vmatpush1.xpose.msra.mxu0 0.0
        %851 = vmatprep.subr.mxu0 0.0
        %852 = vmatpush1.xpose.msra.mxu0 0.0
        %853 = vmatprep.subr.mxu0 0.0
        %854 = vmatpush1.xpose.msra.mxu0 0.0
        %855 = vmatprep.subr.mxu0 0.0
        %856 = vmatpush1.xpose.msra.mxu0 0.0
        %857 = vmatprep.subr.mxu0 0.0
        %858 = vmatpush1.xpose.msra.mxu0 0.0
        %859 = vmatprep.subr.mxu0 0.0
        %860 = vmatpush1.xpose.msra.mxu0 0.0
        %861 = vmatprep.subr.mxu0 0.0
        %862 = vmatpush1.xpose.msra.mxu0 0.0
        %863 = vmatprep.subr.mxu0 0.0
        %864 = vmatpush1.xpose.msra.mxu0 0.0
        %865 = vmatprep.subr.mxu0 0.0
        %866 = vmatpush1.xpose.msra.mxu0 0.0
        %867 = vmatprep.subr.mxu0 0.0
        %868 = vmatpush1.xpose.msra.mxu0 0.0
        %869 = vmatprep.subr.mxu0 0.0
        %870 = vmatpush1.xpose.msra.mxu0 0.0
        %871 = vmatprep.subr.mxu0 0.0
        %872 = vmatpush1.xpose.msra.mxu0 0.0
        %873 = vmatprep.subr.mxu0 0.0
        %874 = vmatpush1.xpose.msra.mxu0 0.0
        %875 = vmatprep.subr.mxu0 0.0
        %876 = vmatpush1.xpose.msra.mxu0 0.0
        %877 = vmatprep.subr.mxu0 0.0
        %878 = vmatpush1.xpose.msra.mxu0 0.0
        %879 = vmatprep.subr.mxu0 0.0
        %880 = vmatpush1.xpose.msra.mxu0 0.0
        %881 = vmatprep.mubr.f32.mxu0 0.0
        %882 = vmatmul.mubr.f32.gmra.mrb[0].mxu0 %v813
        %v883 = vpop.f32.mrb[0].mxu0
        %v884 = vadd.f32 0.0, %v883
        %v885 = vpop.f32.mrb[0].mxu0
        %886 = vdwg.mxu0
        %v887 = vmul.f32 %v884, 0.25
        %v888 = vmul.f32 %v887, %v640
        %vm889 = vcmask 64512
        %v890 = vsel %vm889, %v888, -inf
        %v891 = vrot.slane %v890, 4
        %v892 = vmax.f32 %v890, %v891
        %v893 = vrot.slane %v892, 2
        %v894 = vmax.f32 %v892, %v893
        %v895 = vrot.slane %v894, 1
        %v896 = vmax.f32 %v894, %v895
        %v897 = vsub.f32 %v888, %v896
        %v898 = vmul.f32 %v897, 1.442695
        %v899 = vpow.pop %v898
        %v900 = vsel %vm889, %v899, 0.0
        %v901 = vrot.slane %v900, 4
        %v902 = vadd.f32 %v900, %v901
        %v903 = vrot.slane %v902, 2
        %v904 = vadd.f32 %v902, %v903
        %v905 = vrot.slane %v904, 1
        %v906 = vadd.f32 %v904, %v905
        %v907 = vrcp.pop %v906
        %v908 = vmul.f32 %v899, %v907
        %v910 = vsel %vm889, %v908, 0
        %912 = vmatprep.subr.mxu0 0.0
        %913 = vmatpush1.msra.mxu0 %v806
        %914 = vmatprep.subr.mxu0 0.0
        %915 = vmatpush1.msra.mxu0 0.0
        %916 = vmatprep.subr.mxu0 0.0
        %917 = vmatpush1.msra.mxu0 0.0
        %918 = vmatprep.subr.mxu0 0.0
        %919 = vmatpush1.msra.mxu0 0.0
        %920 = vmatprep.subr.mxu0 0.0
        %921 = vmatpush1.msra.mxu0 0.0
        %922 = vmatprep.subr.mxu0 0.0
        %923 = vmatpush1.msra.mxu0 0.0
        %924 = vmatprep.subr.mxu0 0.0
        %925 = vmatpush1.msra.mxu0 0.0
        %926 = vmatprep.subr.mxu0 0.0
        %927 = vmatpush1.msra.mxu0 0.0
        %928 = vmatprep.subr.mxu0 0.0
        %929 = vmatpush1.msra.mxu0 0.0
        %930 = vmatprep.subr.mxu0 0.0
        %931 = vmatpush1.msra.mxu0 0.0
        %932 = vmatprep.subr.mxu0 0.0
        %933 = vmatpush1.msra.mxu0 0.0
        %934 = vmatprep.subr.mxu0 0.0
        %935 = vmatpush1.msra.mxu0 0.0
        %936 = vmatprep.subr.mxu0 0.0
        %937 = vmatpush1.msra.mxu0 0.0
        %938 = vmatprep.subr.mxu0 0.0
        %939 = vmatpush1.msra.mxu0 0.0
        %940 = vmatprep.subr.mxu0 0.0
        %941 = vmatpush1.msra.mxu0 0.0
        %942 = vmatprep.subr.mxu0 0.0
        %943 = vmatpush1.msra.mxu0 0.0
        %944 = vmatprep.subr.mxu0 0.0
        %945 = vmatpush1.msra.mxu0 0.0
        %946 = vmatprep.subr.mxu0 0.0
        %947 = vmatpush1.msra.mxu0 0.0
        %948 = vmatprep.subr.mxu0 0.0
        %949 = vmatpush1.msra.mxu0 0.0
        %950 = vmatprep.subr.mxu0 0.0
        %951 = vmatpush1.msra.mxu0 0.0
        %952 = vmatprep.subr.mxu0 0.0
        %953 = vmatpush1.msra.mxu0 0.0
        %954 = vmatprep.subr.mxu0 0.0
        %955 = vmatpush1.msra.mxu0 0.0
        %956 = vmatprep.subr.mxu0 0.0
        %957 = vmatpush1.msra.mxu0 0.0
        %958 = vmatprep.subr.mxu0 0.0
        %959 = vmatpush1.msra.mxu0 0.0
        %960 = vmatprep.subr.mxu0 0.0
        %961 = vmatpush1.msra.mxu0 0.0
        %962 = vmatprep.subr.mxu0 0.0
        %963 = vmatpush1.msra.mxu0 0.0
        %964 = vmatprep.subr.mxu0 0.0
        %965 = vmatpush1.msra.mxu0 0.0
        %966 = vmatprep.subr.mxu0 0.0
        %967 = vmatpush1.msra.mxu0 0.0
        %968 = vmatprep.subr.mxu0 0.0
        %969 = vmatpush1.msra.mxu0 0.0
        %970 = vmatprep.subr.mxu0 0.0
        %971 = vmatpush1.msra.mxu0 0.0
        %972 = vmatprep.subr.mxu0 0.0
        %973 = vmatpush1.msra.mxu0 0.0
        %974 = vmatprep.subr.mxu0 0.0
        %975 = vmatpush1.msra.mxu0 0.0
        %976 = vmatprep.mubr.f32.mxu0 0.0
        %977 = vmatmul.mubr.f32.gmra.mrb[0].mxu0 %v910
        %v978 = vpop.f32.mrb[0].mxu0
        %v979 = vadd.f32 0.0, %v978
        %v980 = vpop.f32.mrb[0].mxu0
        %981 = vdwg.mxu0
        %982 = vrot.lane.b32.xlu0 %v720, 112
        %v983 = vpop.permute.xlu0 %982
        %984 = vrot.lane.b32.xlu0 %v720, 80
        %v985 = vpop.permute.xlu0 %984
        %v986 = vsel %vm812, %v983, 0
        %v988 = vsel %vm812, %v985, 0
        %990 = vmatprep.subr.mxu0 0.0
        %991 = vmatpush1.xpose.msra.mxu0 %v988
        %992 = vmatprep.subr.mxu0 0.0
        %993 = vmatpush1.xpose.msra.mxu0 0.0
        %994 = vmatprep.subr.mxu0 0.0
        %995 = vmatpush1.xpose.msra.mxu0 0.0
        %996 = vmatprep.subr.mxu0 0.0
        %997 = vmatpush1.xpose.msra.mxu0 0.0
        %998 = vmatprep.subr.mxu0 0.0
        %999 = vmatpush1.xpose.msra.mxu0 0.0
        %1000 = vmatprep.subr.mxu0 0.0
        %1001 = vmatpush1.xpose.msra.mxu0 0.0
        %1002 = vmatprep.subr.mxu0 0.0
        %1003 = vmatpush1.xpose.msra.mxu0 0.0
        %1004 = vmatprep.subr.mxu0 0.0
        %1005 = vmatpush1.xpose.msra.mxu0 0.0
        %1006 = vmatprep.subr.mxu0 0.0
        %1007 = vmatpush1.xpose.msra.mxu0 0.0
        %1008 = vmatprep.subr.mxu0 0.0
        %1009 = vmatpush1.xpose.msra.mxu0 0.0
        %1010 = vmatprep.subr.mxu0 0.0
        %1011 = vmatpush1.xpose.msra.mxu0 0.0
        %1012 = vmatprep.subr.mxu0 0.0
        %1013 = vmatpush1.xpose.msra.mxu0 0.0
        %1014 = vmatprep.subr.mxu0 0.0
        %1015 = vmatpush1.xpose.msra.mxu0 0.0
        %1016 = vmatprep.subr.mxu0 0.0
        %1017 = vmatpush1.xpose.msra.mxu0 0.0
        %1018 = vmatprep.subr.mxu0 0.0
        %1019 = vmatpush1.xpose.msra.mxu0 0.0
        %1020 = vmatprep.subr.mxu0 0.0
        %1021 = vmatpush1.xpose.msra.mxu0 0.0
        %1022 = vmatprep.subr.mxu0 0.0
        %1023 = vmatpush1.xpose.msra.mxu0 0.0
        %1024 = vmatprep.subr.mxu0 0.0
        %1025 = vmatpush1.xpose.msra.mxu0 0.0
        %1026 = vmatprep.subr.mxu0 0.0
        %1027 = vmatpush1.xpose.msra.mxu0 0.0
        %1028 = vmatprep.subr.mxu0 0.0
        %1029 = vmatpush1.xpose.msra.mxu0 0.0
        %1030 = vmatprep.subr.mxu0 0.0
        %1031 = vmatpush1.xpose.msra.mxu0 0.0
        %1032 = vmatprep.subr.mxu0 0.0
        %1033 = vmatpush1.xpose.msra.mxu0 0.0
        %1034 = vmatprep.subr.mxu0 0.0
        %1035 = vmatpush1.xpose.msra.mxu0 0.0
        %1036 = vmatprep.subr.mxu0 0.0
        %1037 = vmatpush1.xpose.msra.mxu0 0.0
        %1038 = vmatprep.subr.mxu0 0.0
        %1039 = vmatpush1.xpose.msra.mxu0 0.0
        %1040 = vmatprep.subr.mxu0 0.0
        %1041 = vmatpush1.xpose.msra.mxu0 0.0
        %1042 = vmatprep.subr.mxu0 0.0
        %1043 = vmatpush1.xpose.msra.mxu0 0.0
        %1044 = vmatprep.subr.mxu0 0.0
        %1045 = vmatpush1.xpose.msra.mxu0 0.0
        %1046 = vmatprep.subr.mxu0 0.0
        %1047 = vmatpush1.xpose.msra.mxu0 0.0
        %1048 = vmatprep.subr.mxu0 0.0
        %1049 = vmatpush1.xpose.msra.mxu0 0.0
        %1050 = vmatprep.subr.mxu0 0.0
        %1051 = vmatpush1.xpose.msra.mxu0 0.0
        %1052 = vmatprep.subr.mxu0 0.0
        %1053 = vmatpush1.xpose.msra.mxu0 0.0
        %1054 = vmatprep.mubr.f32.mxu0 0.0
        %1055 = vmatmul.mubr.f32.gmra.mrb[0].mxu0 %v986
        %v1056 = vpop.f32.mrb[0].mxu0
        %v1057 = vadd.f32 0.0, %v1056
        %v1058 = vpop.f32.mrb[0].mxu0
        %1059 = vdwg.mxu0
        %v1060 = vmul.f32 %v1057, 0.25
        %v1061 = vmul.f32 %v1060, %v640
        %v1062 = vsel %vm889, %v1061, -inf
        %v1063 = vrot.slane %v1062, 4
        %v1064 = vmax.f32 %v1062, %v1063
        %v1065 = vrot.slane %v1064, 2
        %v1066 = vmax.f32 %v1064, %v1065
        %v1067 = vrot.slane %v1066, 1
        %v1068 = vmax.f32 %v1066, %v1067
        %v1069 = vsub.f32 %v1061, %v1068
        %v1070 = vmul.f32 %v1069, 1.442695
        %v1071 = vpow.pop %v1070
        %v1072 = vsel %vm889, %v1071, 0.0
        %v1073 = vrot.slane %v1072, 4
        %v1074 = vadd.f32 %v1072, %v1073
        %v1075 = vrot.slane %v1074, 2
        %v1076 = vadd.f32 %v1074, %v1075
        %v1077 = vrot.slane %v1076, 1
        %v1078 = vadd.f32 %v1076, %v1077
        %v1079 = vrcp.pop %v1078
        %v1080 = vmul.f32 %v1071, %v1079
        %1082 = vrot.lane.b32.xlu0 %v806, 112
        %v1083 = vpop.permute.xlu0 %1082
        %v1086 = vsel %vm889, %v1080, 0
        %1088 = vmatprep.subr.mxu0 0.0
        %1089 = vmatpush1.msra.mxu0 %v1083
        %1090 = vmatprep.subr.mxu0 0.0
        %1091 = vmatpush1.msra.mxu0 0.0
        %1092 = vmatprep.subr.mxu0 0.0
        %1093 = vmatpush1.msra.mxu0 0.0
        %1094 = vmatprep.subr.mxu0 0.0
        %1095 = vmatpush1.msra.mxu0 0.0
        %1096 = vmatprep.subr.mxu0 0.0
        %1097 = vmatpush1.msra.mxu0 0.0
        %1098 = vmatprep.subr.mxu0 0.0
        %1099 = vmatpush1.msra.mxu0 0.0
        %1100 = vmatprep.subr.mxu0 0.0
        %1101 = vmatpush1.msra.mxu0 0.0
        %1102 = vmatprep.subr.mxu0 0.0
        %1103 = vmatpush1.msra.mxu0 0.0
        %1104 = vmatprep.subr.mxu0 0.0
        %1105 = vmatpush1.msra.mxu0 0.0
        %1106 = vmatprep.subr.mxu0 0.0
        %1107 = vmatpush1.msra.mxu0 0.0
        %1108 = vmatprep.subr.mxu0 0.0
        %1109 = vmatpush1.msra.mxu0 0.0
        %1110 = vmatprep.subr.mxu0 0.0
        %1111 = vmatpush1.msra.mxu0 0.0
        %1112 = vmatprep.subr.mxu0 0.0
        %1113 = vmatpush1.msra.mxu0 0.0
        %1114 = vmatprep.subr.mxu0 0.0
        %1115 = vmatpush1.msra.mxu0 0.0
        %1116 = vmatprep.subr.mxu0 0.0
        %1117 = vmatpush1.msra.mxu0 0.0
        %1118 = vmatprep.subr.mxu0 0.0
        %1119 = vmatpush1.msra.mxu0 0.0
        %1120 = vmatprep.subr.mxu0 0.0
        %1121 = vmatpush1.msra.mxu0 0.0
        %1122 = vmatprep.subr.mxu0 0.0
        %1123 = vmatpush1.msra.mxu0 0.0
        %1124 = vmatprep.subr.mxu0 0.0
        %1125 = vmatpush1.msra.mxu0 0.0
        %1126 = vmatprep.subr.mxu0 0.0
        %1127 = vmatpush1.msra.mxu0 0.0
        %1128 = vmatprep.subr.mxu0 0.0
        %1129 = vmatpush1.msra.mxu0 0.0
        %1130 = vmatprep.subr.mxu0 0.0
        %1131 = vmatpush1.msra.mxu0 0.0
        %1132 = vmatprep.subr.mxu0 0.0
        %1133 = vmatpush1.msra.mxu0 0.0
        %1134 = vmatprep.subr.mxu0 0.0
        %1135 = vmatpush1.msra.mxu0 0.0
        %1136 = vmatprep.subr.mxu0 0.0
        %1137 = vmatpush1.msra.mxu0 0.0
        %1138 = vmatprep.subr.mxu0 0.0
        %1139 = vmatpush1.msra.mxu0 0.0
        %1140 = vmatprep.subr.mxu0 0.0
        %1141 = vmatpush1.msra.mxu0 0.0
        %1142 = vmatprep.subr.mxu0 0.0
        %1143 = vmatpush1.msra.mxu0 0.0
        %1144 = vmatprep.subr.mxu0 0.0
        %1145 = vmatpush1.msra.mxu0 0.0
        %1146 = vmatprep.subr.mxu0 0.0
        %1147 = vmatpush1.msra.mxu0 0.0
        %1148 = vmatprep.subr.mxu0 0.0
        %1149 = vmatpush1.msra.mxu0 0.0
        %1150 = vmatprep.subr.mxu0 0.0
        %1151 = vmatpush1.msra.mxu0 0.0
        %1152 = vmatprep.mubr.f32.mxu0 0.0
        %1153 = vmatmul.mubr.f32.gmra.mrb[0].mxu0 %v1086
        %v1154 = vpop.f32.mrb[0].mxu0
        %v1155 = vadd.f32 0.0, %v1154
        %v1156 = vpop.f32.mrb[0].mxu0
        %1157 = vdwg.mxu0
        %1159 = vrot.lane.b32.xlu0 %v1155, 16
        %v1160 = vpop.permute.xlu0 %1159
        %v1162 = vsel %vm812, %v979, %v1160
        %v1164 = vsel %vm649, %v1162, 0
        %1166 = vmatprep.subr.mxu0 0.0
        %1167 = vmatpush1.msra.mxu0 %v645
        %1168 = vmatprep.subr.mxu0 0.0
        %1169 = vmatpush1.msra.mxu0 %v646
        %1170 = vmatprep.subr.mxu0 0.0
        %1171 = vmatpush1.msra.mxu0 %v647
        %1172 = vmatprep.subr.mxu0 0.0
        %1173 = vmatpush1.msra.mxu0 %v648
        %1174 = vmatprep.subr.mxu0 0.0
        %1175 = vmatpush1.msra.mxu0 0.0
        %1176 = vmatprep.subr.mxu0 0.0
        %1177 = vmatpush1.msra.mxu0 0.0
        %1178 = vmatprep.subr.mxu0 0.0
        %1179 = vmatpush1.msra.mxu0 0.0
        %1180 = vmatprep.subr.mxu0 0.0
        %1181 = vmatpush1.msra.mxu0 0.0
        %1182 = vmatprep.subr.mxu0 0.0
        %1183 = vmatpush1.msra.mxu0 0.0
        %1184 = vmatprep.subr.mxu0 0.0
        %1185 = vmatpush1.msra.mxu0 0.0
        %1186 = vmatprep.subr.mxu0 0.0
        %1187 = vmatpush1.msra.mxu0 0.0
        %1188 = vmatprep.subr.mxu0 0.0
        %1189 = vmatpush1.msra.mxu0 0.0
        %1190 = vmatprep.subr.mxu0 0.0
        %1191 = vmatpush1.msra.mxu0 0.0
        %1192 = vmatprep.subr.mxu0 0.0
        %1193 = vmatpush1.msra.mxu0 0.0
        %1194 = vmatprep.subr.mxu0 0.0
        %1195 = vmatpush1.msra.mxu0 0.0
        %1196 = vmatprep.subr.mxu0 0.0
        %1197 = vmatpush1.msra.mxu0 0.0
        %1198 = vmatprep.subr.mxu0 0.0
        %1199 = vmatpush1.msra.mxu0 0.0
        %1200 = vmatprep.subr.mxu0 0.0
        %1201 = vmatpush1.msra.mxu0 0.0
        %1202 = vmatprep.subr.mxu0 0.0
        %1203 = vmatpush1.msra.mxu0 0.0
        %1204 = vmatprep.subr.mxu0 0.0
        %1205 = vmatpush1.msra.mxu0 0.0
        %1206 = vmatprep.subr.mxu0 0.0
        %1207 = vmatpush1.msra.mxu0 0.0
        %1208 = vmatprep.subr.mxu0 0.0
        %1209 = vmatpush1.msra.mxu0 0.0
        %1210 = vmatprep.subr.mxu0 0.0
        %1211 = vmatpush1.msra.mxu0 0.0
        %1212 = vmatprep.subr.mxu0 0.0
        %1213 = vmatpush1.msra.mxu0 0.0
        %1214 = vmatprep.subr.mxu0 0.0
        %1215 = vmatpush1.msra.mxu0 0.0
        %1216 = vmatprep.subr.mxu0 0.0
        %1217 = vmatpush1.msra.mxu0 0.0
        %1218 = vmatprep.subr.mxu0 0.0
        %1219 = vmatpush1.msra.mxu0 0.0
        %1220 = vmatprep.subr.mxu0 0.0
        %1221 = vmatpush1.msra.mxu0 0.0
        %1222 = vmatprep.subr.mxu0 0.0
        %1223 = vmatpush1.msra.mxu0 0.0
        %1224 = vmatprep.subr.mxu0 0.0
        %1225 = vmatpush1.msra.mxu0 0.0
        %1226 = vmatprep.subr.mxu0 0.0
        %1227 = vmatpush1.msra.mxu0 0.0
        %1228 = vmatprep.subr.mxu0 0.0
        %1229 = vmatpush1.msra.mxu0 0.0
        %1230 = vmatprep.mubr.f32.mxu0 0.0
        %1231 = vmatmul.mubr.f32.gmra.mrb[0].mxu0 %v1164
        %v1232 = vpop.f32.mrb[0].mxu0
        %v1233 = vadd.f32 0.0, %v1232
        %v1234 = vpop.f32.mrb[0].mxu0
        %1235 = vdwg.mxu0
        %v1236 = vadd.f32 %v617, %v1233
        %v1237 = vsel %vm649, %v1236, 0.0
        %1238 = vadd.xlane.f32.xlu0 %v1237
        %v1239 = vpop.xlane.xlu0 %1238
        %v1240 = vrcp.pop 32.0
        %v1241 = vmul.f32 %v1239, %v1240
        %v1242 = vsub.f32 %v1236, %v1241
        %v1243 = vmul.f32 %v1242, %v1242
        %v1244 = vsel %vm649, %v1243, 0.0
        %1245 = vadd.xlane.f32.xlu0 %v1244
        %v1246 = vpop.xlane.xlu0 %1245
        %v1247 = vmul.f32 %v1246, %v1240
        %v1248 = vadd.f32 %v1247, 1e-05
        %v1249 = vrsqrt.pop %v1248
        %v1250 = vmul.f32 %v1242, %v1249
        %v1251 = vld [vmem:[%s609] sm:$0xff]
        %v1252 = vld [vmem:[%s609 + $0x8] sm:$0xff]
        %v1253 = vld [vmem:[%s609 + $0x10] sm:$0xff]
        %v1254 = vld [vmem:[%s609 + $0x18] sm:$0xff]
        %v1255 = vld [vmem:[#allocation11] sm:$0xff]
        %v1256 = vld [vmem:[#allocation11 + $0x8] sm:$0xff]
        %v1257 = vld [vmem:[#allocation11 + $0x10] sm:$0xff]
        %v1258 = vld [vmem:[#allocation11 + $0x18] sm:$0xff]
        %v1260 = vsel %vm649, %v618, 0
        %1262 = vmatprep.subr.mxu0 0.0
        %1263 = vmatpush1.msra.mxu0 %v1251
        %1264 = vmatprep.subr.mxu0 0.0
        %1265 = vmatpush1.msra.mxu0 %v1252
        %1266 = vmatprep.subr.mxu0 0.0
        %1267 = vmatpush1.msra.mxu0 %v1253
        %1268 = vmatprep.subr.mxu0 0.0
        %1269 = vmatpush1.msra.mxu0 %v1254
        %1270 = vmatprep.subr.mxu0 0.0
        %1271 = vmatpush1.msra.mxu0 0.0
        %1272 = vmatprep.subr.mxu0 0.0
        %1273 = vmatpush1.msra.mxu0 0.0
        %1274 = vmatprep.subr.mxu0 0.0
        %1275 = vmatpush1.msra.mxu0 0.0
        %1276 = vmatprep.subr.mxu0 0.0
        %1277 = vmatpush1.msra.mxu0 0.0
        %1278 = vmatprep.subr.mxu0 0.0
        %1279 = vmatpush1.msra.mxu0 0.0
        %1280 = vmatprep.subr.mxu0 0.0
        %1281 = vmatpush1.msra.mxu0 0.0
        %1282 = vmatprep.subr.mxu0 0.0
        %1283 = vmatpush1.msra.mxu0 0.0
        %1284 = vmatprep.subr.mxu0 0.0
        %1285 = vmatpush1.msra.mxu0 0.0
        %1286 = vmatprep.subr.mxu0 0.0
        %1287 = vmatpush1.msra.mxu0 0.0
        %1288 = vmatprep.subr.mxu0 0.0
        %1289 = vmatpush1.msra.mxu0 0.0
        %1290 = vmatprep.subr.mxu0 0.0
        %1291 = vmatpush1.msra.mxu0 0.0
        %1292 = vmatprep.subr.mxu0 0.0
        %1293 = vmatpush1.msra.mxu0 0.0
        %1294 = vmatprep.subr.mxu0 0.0
        %1295 = vmatpush1.msra.mxu0 0.0
        %1296 = vmatprep.subr.mxu0 0.0
        %1297 = vmatpush1.msra.mxu0 0.0
        %1298 = vmatprep.subr.mxu0 0.0
        %1299 = vmatpush1.msra.mxu0 0.0
        %1300 = vmatprep.subr.mxu0 0.0
        %1301 = vmatpush1.msra.mxu0 0.0
        %1302 = vmatprep.subr.mxu0 0.0
        %1303 = vmatpush1.msra.mxu0 0.0
        %1304 = vmatprep.subr.mxu0 0.0
        %1305 = vmatpush1.msra.mxu0 0.0
        %1306 = vmatprep.subr.mxu0 0.0
        %1307 = vmatpush1.msra.mxu0 0.0
        %1308 = vmatprep.subr.mxu0 0.0
        %1309 = vmatpush1.msra.mxu0 0.0
        %1310 = vmatprep.subr.mxu0 0.0
        %1311 = vmatpush1.msra.mxu0 0.0
        %1312 = vmatprep.subr.mxu0 0.0
        %1313 = vmatpush1.msra.mxu0 0.0
        %1314 = vmatprep.subr.mxu0 0.0
        %1315 = vmatpush1.msra.mxu0 0.0
        %1316 = vmatprep.subr.mxu0 0.0
        %1317 = vmatpush1.msra.mxu0 0.0
        %1318 = vmatprep.subr.mxu0 0.0
        %1319 = vmatpush1.msra.mxu0 0.0
        %1320 = vmatprep.subr.mxu0 0.0
        %1321 = vmatpush1.msra.mxu0 0.0
        %1322 = vmatprep.subr.mxu0 0.0
        %1323 = vmatpush1.msra.mxu0 0.0
        %1324 = vmatprep.subr.mxu0 0.0
        %1325 = vmatpush1.msra.mxu0 0.0
        %1326 = vmatprep.mubr.f32.mxu0 0.0
        %1327 = vmatmul.mubr.f32.gmra.mrb[0].mxu0 %v1260
        %v1328 = vpop.f32.mrb[0].mxu0
        %v1329 = vadd.f32 0.0, %v1328
        %v1330 = vpop.f32.mrb[0].mxu0
        %1331 = vdwg.mxu0
        %1336 = vrot.lane.b32.xlu0 %v1251, 64
        %v1337 = vpop.permute.xlu0 %1336
        %1338 = vrot.lane.b32.xlu0 %v1252, 64
        %v1339 = vpop.permute.xlu0 %1338
        %1340 = vrot.lane.b32.xlu0 %v1253, 64
        %v1341 = vpop.permute.xlu0 %1340
        %1342 = vrot.lane.b32.xlu0 %v1254, 64
        %v1343 = vpop.permute.xlu0 %1342
        %v1349 = vsel %vm649, %v1250, 0
        %1351 = vmatprep.subr.mxu0 0.0
        %1352 = vmatpush1.msra.mxu0 %v1337
        %1353 = vmatprep.subr.mxu0 0.0
        %1354 = vmatpush1.msra.mxu0 %v1339
        %1355 = vmatprep.subr.mxu0 0.0
        %1356 = vmatpush1.msra.mxu0 %v1341
        %1357 = vmatprep.subr.mxu0 0.0
        %1358 = vmatpush1.msra.mxu0 %v1343
        %1359 = vmatprep.subr.mxu0 0.0
        %1360 = vmatpush1.msra.mxu0 0.0
        %1361 = vmatprep.subr.mxu0 0.0
        %1362 = vmatpush1.msra.mxu0 0.0
        %1363 = vmatprep.subr.mxu0 0.0
        %1364 = vmatpush1.msra.mxu0 0.0
        %1365 = vmatprep.subr.mxu0 0.0
        %1366 = vmatpush1.msra.mxu0 0.0
        %1367 = vmatprep.subr.mxu0 0.0
        %1368 = vmatpush1.msra.mxu0 0.0
        %1369 = vmatprep.subr.mxu0 0.0
        %1370 = vmatpush1.msra.mxu0 0.0
        %1371 = vmatprep.subr.mxu0 0.0
        %1372 = vmatpush1.msra.mxu0 0.0
        %1373 = vmatprep.subr.mxu0 0.0
        %1374 = vmatpush1.msra.mxu0 0.0
        %1375 = vmatprep.subr.mxu0 0.0
        %1376 = vmatpush1.msra.mxu0 0.0
        %1377 = vmatprep.subr.mxu0 0.0
        %1378 = vmatpush1.msra.mxu0 0.0
        %1379 = vmatprep.subr.mxu0 0.0
        %1380 = vmatpush1.msra.mxu0 0.0
        %1381 = vmatprep.subr.mxu0 0.0
        %1382 = vmatpush1.msra.mxu0 0.0
        %1383 = vmatprep.subr.mxu0 0.0
        %1384 = vmatpush1.msra.mxu0 0.0
        %1385 = vmatprep.subr.mxu0 0.0
        %1386 = vmatpush1.msra.mxu0 0.0
        %1387 = vmatprep.subr.mxu0 0.0
        %1388 = vmatpush1.msra.mxu0 0.0
        %1389 = vmatprep.subr.mxu0 0.0
        %1390 = vmatpush1.msra.mxu0 0.0
        %1391 = vmatprep.subr.mxu0 0.0
        %1392 = vmatpush1.msra.mxu0 0.0
        %1393 = vmatprep.subr.mxu0 0.0
        %1394 = vmatpush1.msra.mxu0 0.0
        %1395 = vmatprep.subr.mxu0 0.0
        %1396 = vmatpush1.msra.mxu0 0.0
        %1397 = vmatprep.subr.mxu0 0.0
        %1398 = vmatpush1.msra.mxu0 0.0
        %1399 = vmatprep.subr.mxu0 0.0
        %1400 = vmatpush1.msra.mxu0 0.0
        %1401 = vmatprep.subr.mxu0 0.0
        %1402 = vmatpush1.msra.mxu0 0.0
        %1403 = vmatprep.subr.mxu0 0.0
        %1404 = vmatpush1.msra.mxu0 0.0
        %1405 = vmatprep.subr.mxu0 0.0
        %1406 = vmatpush1.msra.mxu0 0.0
        %1407 = vmatprep.subr.mxu0 0.0
        %1408 = vmatpush1.msra.mxu0 0.0
        %1409 = vmatprep.subr.mxu0 0.0
        %1410 = vmatpush1.msra.mxu0 0.0
        %1411 = vmatprep.subr.mxu0 0.0
        %1412 = vmatpush1.msra.mxu0 0.0
        %1413 = vmatprep.subr.mxu0 0.0
        %1414 = vmatpush1.msra.mxu0 0.0
        %1415 = vmatprep.mubr.f32.mxu0 0.0
        %1416 = vmatmul.mubr.f32.gmra.mrb[0].mxu0 %v1349
        %v1417 = vpop.f32.mrb[0].mxu0
        %v1418 = vadd.f32 0.0, %v1417
        %v1419 = vpop.f32.mrb[0].mxu0
        %1420 = vdwg.mxu0
        %1422 = vrot.lane.b32.xlu0 %v1329, 96
        %v1423 = vpop.permute.xlu0 %1422
        %v1424 = vsel %vm812, %v1329, 0
        %v1426 = vsel %vm812, %v1423, 0
        %1428 = vmatprep.subr.mxu0 0.0
        %1429 = vmatpush1.xpose.msra.mxu0 %v1426
        %1430 = vmatprep.subr.mxu0 0.0
        %1431 = vmatpush1.xpose.msra.mxu0 0.0
        %1432 = vmatprep.subr.mxu0 0.0
        %1433 = vmatpush1.xpose.msra.mxu0 0.0
        %1434 = vmatprep.subr.mxu0 0.0
        %1435 = vmatpush1.xpose.msra.mxu0 0.0
        %1436 = vmatprep.subr.mxu0 0.0
        %1437 = vmatpush1.xpose.msra.mxu0 0.0
        %1438 = vmatprep.subr.mxu0 0.0
        %1439 = vmatpush1.xpose.msra.mxu0 0.0
        %1440 = vmatprep.subr.mxu0 0.0
        %1441 = vmatpush1.xpose.msra.mxu0 0.0
        %1442 = vmatprep.subr.mxu0 0.0
        %1443 = vmatpush1.xpose.msra.mxu0 0.0
        %1444 = vmatprep.subr.mxu0 0.0
        %1445 = vmatpush1.xpose.msra.mxu0 0.0
        %1446 = vmatprep.subr.mxu0 0.0
        %1447 = vmatpush1.xpose.msra.mxu0 0.0
        %1448 = vmatprep.subr.mxu0 0.0
        %1449 = vmatpush1.xpose.msra.mxu0 0.0
        %1450 = vmatprep.subr.mxu0 0.0
        %1451 = vmatpush1.xpose.msra.mxu0 0.0
        %1452 = vmatprep.subr.mxu0 0.0
        %1453 = vmatpush1.xpose.msra.mxu0 0.0
        %1454 = vmatprep.subr.mxu0 0.0
        %1455 = vmatpush1.xpose.msra.mxu0 0.0
        %1456 = vmatprep.subr.mxu0 0.0
        %1457 = vmatpush1.xpose.msra.mxu0 0.0
        %1458 = vmatprep.subr.mxu0 0.0
        %1459 = vmatpush1.xpose.msra.mxu0 0.0
        %1460 = vmatprep.subr.mxu0 0.0
        %1461 = vmatpush1.xpose.msra.mxu0 0.0
        %1462 = vmatprep.subr.mxu0 0.0
        %1463 = vmatpush1.xpose.msra.mxu0 0.0
        %1464 = vmatprep.subr.mxu0 0.0
        %1465 = vmatpush1.xpose.msra.mxu0 0.0
        %1466 = vmatprep.subr.mxu0 0.0
        %1467 = vmatpush1.xpose.msra.mxu0 0.0
        %1468 = vmatprep.subr.mxu0 0.0
        %1469 = vmatpush1.xpose.msra.mxu0 0.0
        %1470 = vmatprep.subr.mxu0 0.0
        %1471 = vmatpush1.xpose.msra.mxu0 0.0
        %1472 = vmatprep.subr.mxu0 0.0
        %1473 = vmatpush1.xpose.msra.mxu0 0.0
        %1474 = vmatprep.subr.mxu0 0.0
        %1475 = vmatpush1.xpose.msra.mxu0 0.0
        %1476 = vmatprep.subr.mxu0 0.0
        %1477 = vmatpush1.xpose.msra.mxu0 0.0
        %1478 = vmatprep.subr.mxu0 0.0
        %1479 = vmatpush1.xpose.msra.mxu0 0.0
        %1480 = vmatprep.subr.mxu0 0.0
        %1481 = vmatpush1.xpose.msra.mxu0 0.0
        %1482 = vmatprep.subr.mxu0 0.0
        %1483 = vmatpush1.xpose.msra.mxu0 0.0
        %1484 = vmatprep.subr.mxu0 0.0
        %1485 = vmatpush1.xpose.msra.mxu0 0.0
        %1486 = vmatprep.subr.mxu0 0.0
        %1487 = vmatpush1.xpose.msra.mxu0 0.0
        %1488 = vmatprep.subr.mxu0 0.0
        %1489 = vmatpush1.xpose.msra.mxu0 0.0
        %1490 = vmatprep.subr.mxu0 0.0
        %1491 = vmatpush1.xpose.msra.mxu0 0.0
        %1492 = vmatprep.mubr.f32.mxu0 0.0
        %1493 = vmatmul.mubr.f32.gmra.mrb[0].mxu0 %v1424
        %v1494 = vpop.f32.mrb[0].mxu0
        %v1495 = vadd.f32 0.0, %v1494
        %v1496 = vpop.f32.mrb[0].mxu0
        %1497 = vdwg.mxu0
        %v1498 = vmul.f32 %v1495, 0.25
        %v1499 = vsel %vm889, %v1498, -inf
        %v1500 = vrot.slane %v1499, 4
        %v1501 = vmax.f32 %v1499, %v1500
        %v1502 = vrot.slane %v1501, 2
        %v1503 = vmax.f32 %v1501, %v1502
        %v1504 = vrot.slane %v1503, 1
        %v1505 = vmax.f32 %v1503, %v1504
        %v1506 = vsub.f32 %v1498, %v1505
        %v1507 = vmul.f32 %v1506, 1.442695
        %v1508 = vpow.pop %v1507
        %v1509 = vsel %vm889, %v1508, 0.0
        %v1510 = vrot.slane %v1509, 4
        %v1511 = vadd.f32 %v1509, %v1510
        %v1512 = vrot.slane %v1511, 2
        %v1513 = vadd.f32 %v1511, %v1512
        %v1514 = vrot.slane %v1513, 1
        %v1515 = vadd.f32 %v1513, %v1514
        %v1516 = vrcp.pop %v1515
        %v1517 = vmul.f32 %v1508, %v1516
        %v1518 = vmul.f32 %v1517, %v632
        %v1520 = vsel %vm889, %v1518, 0
        %1522 = vmatprep.subr.mxu0 0.0
        %1523 = vmatpush1.msra.mxu0 %v1418
        %1524 = vmatprep.subr.mxu0 0.0
        %1525 = vmatpush1.msra.mxu0 0.0
        %1526 = vmatprep.subr.mxu0 0.0
        %1527 = vmatpush1.msra.mxu0 0.0
        %1528 = vmatprep.subr.mxu0 0.0
        %1529 = vmatpush1.msra.mxu0 0.0
        %1530 = vmatprep.subr.mxu0 0.0
        %1531 = vmatpush1.msra.mxu0 0.0
        %1532 = vmatprep.subr.mxu0 0.0
        %1533 = vmatpush1.msra.mxu0 0.0
        %1534 = vmatprep.subr.mxu0 0.0
        %1535 = vmatpush1.msra.mxu0 0.0
        %1536 = vmatprep.subr.mxu0 0.0
        %1537 = vmatpush1.msra.mxu0 0.0
        %1538 = vmatprep.subr.mxu0 0.0
        %1539 = vmatpush1.msra.mxu0 0.0
        %1540 = vmatprep.subr.mxu0 0.0
        %1541 = vmatpush1.msra.mxu0 0.0
        %1542 = vmatprep.subr.mxu0 0.0
        %1543 = vmatpush1.msra.mxu0 0.0
        %1544 = vmatprep.subr.mxu0 0.0
        %1545 = vmatpush1.msra.mxu0 0.0
        %1546 = vmatprep.subr.mxu0 0.0
        %1547 = vmatpush1.msra.mxu0 0.0
        %1548 = vmatprep.subr.mxu0 0.0
        %1549 = vmatpush1.msra.mxu0 0.0
        %1550 = vmatprep.subr.mxu0 0.0
        %1551 = vmatpush1.msra.mxu0 0.0
        %1552 = vmatprep.subr.mxu0 0.0
        %1553 = vmatpush1.msra.mxu0 0.0
        %1554 = vmatprep.subr.mxu0 0.0
        %1555 = vmatpush1.msra.mxu0 0.0
        %1556 = vmatprep.subr.mxu0 0.0
        %1557 = vmatpush1.msra.mxu0 0.0
        %1558 = vmatprep.subr.mxu0 0.0
        %1559 = vmatpush1.msra.mxu0 0.0
        %1560 = vmatprep.subr.mxu0 0.0
        %1561 = vmatpush1.msra.mxu0 0.0
        %1562 = vmatprep.subr.mxu0 0.0
        %1563 = vmatpush1.msra.mxu0 0.0
        %1564 = vmatprep.subr.mxu0 0.0
        %1565 = vmatpush1.msra.mxu0 0.0
        %1566 = vmatprep.subr.mxu0 0.0
        %1567 = vmatpush1.msra.mxu0 0.0
        %1568 = vmatprep.subr.mxu0 0.0
        %1569 = vmatpush1.msra.mxu0 0.0
        %1570 = vmatprep.subr.mxu0 0.0
        %1571 = vmatpush1.msra.mxu0 0.0
        %1572 = vmatprep.subr.mxu0 0.0
        %1573 = vmatpush1.msra.mxu0 0.0
        %1574 = vmatprep.subr.mxu0 0.0
        %1575 = vmatpush1.msra.mxu0 0.0
        %1576 = vmatprep.subr.mxu0 0.0
        %1577 = vmatpush1.msra.mxu0 0.0
        %1578 = vmatprep.subr.mxu0 0.0
        %1579 = vmatpush1.msra.mxu0 0.0
        %1580 = vmatprep.subr.mxu0 0.0
        %1581 = vmatpush1.msra.mxu0 0.0
        %1582 = vmatprep.subr.mxu0 0.0
        %1583 = vmatpush1.msra.mxu0 0.0
        %1584 = vmatprep.subr.mxu0 0.0
        %1585 = vmatpush1.msra.mxu0 0.0
        %1586 = vmatprep.mubr.f32.mxu0 0.0
        %1587 = vmatmul.mubr.f32.gmra.mrb[0].mxu0 %v1520
        %v1588 = vpop.f32.mrb[0].mxu0
        %v1589 = vadd.f32 0.0, %v1588
        %v1590 = vpop.f32.mrb[0].mxu0
        %1591 = vdwg.mxu0
        %1592 = vrot.lane.b32.xlu0 %v1329, 112
        %v1593 = vpop.permute.xlu0 %1592
        %1594 = vrot.lane.b32.xlu0 %v1329, 80
        %v1595 = vpop.permute.xlu0 %1594
        %v1596 = vsel %vm812, %v1593, 0
        %v1598 = vsel %vm812, %v1595, 0
        %1600 = vmatprep.subr.mxu0 0.0
        %1601 = vmatpush1.xpose.msra.mxu0 %v1598
        %1602 = vmatprep.subr.mxu0 0.0
        %1603 = vmatpush1.xpose.msra.mxu0 0.0
        %1604 = vmatprep.subr.mxu0 0.0
        %1605 = vmatpush1.xpose.msra.mxu0 0.0
        %1606 = vmatprep.subr.mxu0 0.0
        %1607 = vmatpush1.xpose.msra.mxu0 0.0
        %1608 = vmatprep.subr.mxu0 0.0
        %1609 = vmatpush1.xpose.msra.mxu0 0.0
        %1610 = vmatprep.subr.mxu0 0.0
        %1611 = vmatpush1.xpose.msra.mxu0 0.0
        %1612 = vmatprep.subr.mxu0 0.0
        %1613 = vmatpush1.xpose.msra.mxu0 0.0
        %1614 = vmatprep.subr.mxu0 0.0
        %1615 = vmatpush1.xpose.msra.mxu0 0.0
        %1616 = vmatprep.subr.mxu0 0.0
        %1617 = vmatpush1.xpose.msra.mxu0 0.0
        %1618 = vmatprep.subr.mxu0 0.0
        %1619 = vmatpush1.xpose.msra.mxu0 0.0
        %1620 = vmatprep.subr.mxu0 0.0
        %1621 = vmatpush1.xpose.msra.mxu0 0.0
        %1622 = vmatprep.subr.mxu0 0.0
        %1623 = vmatpush1.xpose.msra.mxu0 0.0
        %1624 = vmatprep.subr.mxu0 0.0
        %1625 = vmatpush1.xpose.msra.mxu0 0.0
        %1626 = vmatprep.subr.mxu0 0.0
        %1627 = vmatpush1.xpose.msra.mxu0 0.0
        %1628 = vmatprep.subr.mxu0 0.0
        %1629 = vmatpush1.xpose.msra.mxu0 0.0
        %1630 = vmatprep.subr.mxu0 0.0
        %1631 = vmatpush1.xpose.msra.mxu0 0.0
        %1632 = vmatprep.subr.mxu0 0.0
        %1633 = vmatpush1.xpose.msra.mxu0 0.0
        %1634 = vmatprep.subr.mxu0 0.0
        %1635 = vmatpush1.xpose.msra.mxu0 0.0
        %1636 = vmatprep.subr.mxu0 0.0
        %1637 = vmatpush1.xpose.msra.mxu0 0.0
        %1638 = vmatprep.subr.mxu0 0.0
        %1639 = vmatpush1.xpose.msra.mxu0 0.0
        %1640 = vmatprep.subr.mxu0 0.0
        %1641 = vmatpush1.xpose.msra.mxu0 0.0
        %1642 = vmatprep.subr.mxu0 0.0
        %1643 = vmatpush1.xpose.msra.mxu0 0.0
        %1644 = vmatprep.subr.mxu0 0.0
        %1645 = vmatpush1.xpose.msra.mxu0 0.0
        %1646 = vmatprep.subr.mxu0 0.0
        %1647 = vmatpush1.xpose.msra.mxu0 0.0
        %1648 = vmatprep.subr.mxu0 0.0
        %1649 = vmatpush1.xpose.msra.mxu0 0.0
        %1650 = vmatprep.subr.mxu0 0.0
        %1651 = vmatpush1.xpose.msra.mxu0 0.0
        %1652 = vmatprep.subr.mxu0 0.0
        %1653 = vmatpush1.xpose.msra.mxu0 0.0
        %1654 = vmatprep.subr.mxu0 0.0
        %1655 = vmatpush1.xpose.msra.mxu0 0.0
        %1656 = vmatprep.subr.mxu0 0.0
        %1657 = vmatpush1.xpose.msra.mxu0 0.0
        %1658 = vmatprep.subr.mxu0 0.0
        %1659 = vmatpush1.xpose.msra.mxu0 0.0
        %1660 = vmatprep.subr.mxu0 0.0
        %1661 = vmatpush1.xpose.msra.mxu0 0.0
        %1662 = vmatprep.subr.mxu0 0.0
        %1663 = vmatpush1.xpose.msra.mxu0 0.0
        %1664 = vmatprep.mubr.f32.mxu0 0.0
        %1665 = vmatmul.mubr.f32.gmra.mrb[0].mxu0 %v1596
        %v1666 = vpop.f32.mrb[0].mxu0
        %v1667 = vadd.f32 0.0, %v1666
        %v1668 = vpop.f32.mrb[0].mxu0
        %1669 = vdwg.mxu0
        %v1670 = vmul.f32 %v1667, 0.25
        %v1671 = vsel %vm889, %v1670, -inf
        %v1672 = vrot.slane %v1671, 4
        %v1673 = vmax.f32 %v1671, %v1672
        %v1674 = vrot.slane %v1673, 2
        %v1675 = vmax.f32 %v1673, %v1674
        %v1676 = vrot.slane %v1675, 1
        %v1677 = vmax.f32 %v1675, %v1676
        %v1678 = vsub.f32 %v1670, %v1677
        %v1679 = vmul.f32 %v1678, 1.442695
        %v1680 = vpow.pop %v1679
        %v1681 = vsel %vm889, %v1680, 0.0
        %v1682 = vrot.slane %v1681, 4
        %v1683 = vadd.f32 %v1681, %v1682
        %v1684 = vrot.slane %v1683, 2
        %v1685 = vadd.f32 %v1683, %v1684
        %v1686 = vrot.slane %v1685, 1
        %v1687 = vadd.f32 %v1685, %v1686
        %v1688 = vrcp.pop %v1687
        %v1689 = vmul.f32 %v1680, %v1688
        %v1690 = vmul.f32 %v1689, %v632
        %1692 = vrot.lane.b32.xlu0 %v1418, 112
        %v1693 = vpop.permute.xlu0 %1692
        %v1696 = vsel %vm889, %v1690, 0
        %1698 = vmatprep.subr.mxu0 0.0
        %1699 = vmatpush1.msra.mxu0 %v1693
        %1700 = vmatprep.subr.mxu0 0.0
        %1701 = vmatpush1.msra.mxu0 0.0
        %1702 = vmatprep.subr.mxu0 0.0
        %1703 = vmatpush1.msra.mxu0 0.0
        %1704 = vmatprep.subr.mxu0 0.0
        %1705 = vmatpush1.msra.mxu0 0.0
        %1706 = vmatprep.subr.mxu0 0.0
        %1707 = vmatpush1.msra.mxu0 0.0
        %1708 = vmatprep.subr.mxu0 0.0
        %1709 = vmatpush1.msra.mxu0 0.0
        %1710 = vmatprep.subr.mxu0 0.0
        %1711 = vmatpush1.msra.mxu0 0.0
        %1712 = vmatprep.subr.mxu0 0.0
        %1713 = vmatpush1.msra.mxu0 0.0
        %1714 = vmatprep.subr.mxu0 0.0
        %1715 = vmatpush1.msra.mxu0 0.0
        %1716 = vmatprep.subr.mxu0 0.0
        %1717 = vmatpush1.msra.mxu0 0.0
        %1718 = vmatprep.subr.mxu0 0.0
        %1719 = vmatpush1.msra.mxu0 0.0
        %1720 = vmatprep.subr.mxu0 0.0
        %1721 = vmatpush1.msra.mxu0 0.0
        %1722 = vmatprep.subr.mxu0 0.0
        %1723 = vmatpush1.msra.mxu0 0.0
        %1724 = vmatprep.subr.mxu0 0.0
        %1725 = vmatpush1.msra.mxu0 0.0
        %1726 = vmatprep.subr.mxu0 0.0
        %1727 = vmatpush1.msra.mxu0 0.0
        %1728 = vmatprep.subr.mxu0 0.0
        %1729 = vmatpush1.msra.mxu0 0.0
        %1730 = vmatprep.subr.mxu0 0.0
        %1731 = vmatpush1.msra.mxu0 0.0
        %1732 = vmatprep.subr.mxu0 0.0
        %1733 = vmatpush1.msra.mxu0 0.0
        %1734 = vmatprep.subr.mxu0 0.0
        %1735 = vmatpush1.msra.mxu0 0.0
        %1736 = vmatprep.subr.mxu0 0.0
        %1737 = vmatpush1.msra.mxu0 0.0
        %1738 = vmatprep.subr.mxu0 0.0
        %1739 = vmatpush1.msra.mxu0 0.0
        %1740 = vmatprep.subr.mxu0 0.0
        %1741 = vmatpush1.msra.mxu0 0.0
        %1742 = vmatprep.subr.mxu0 0.0
        %1743 = vmatpush1.msra.mxu0 0.0
        %1744 = vmatprep.subr.mxu0 0.0
        %1745 = vmatpush1.msra.mxu0 0.0
        %1746 = vmatprep.subr.mxu0 0.0
        %1747 = vmatpush1.msra.mxu0 0.0
        %1748 = vmatprep.subr.mxu0 0.0
        %1749 = vmatpush1.msra.mxu0 0.0
        %1750 = vmatprep.subr.mxu0 0.0
        %1751 = vmatpush1.msra.mxu0 0.0
        %1752 = vmatprep.subr.mxu0 0.0
        %1753 = vmatpush1.msra.mxu0 0.0
        %1754 = vmatprep.subr.mxu0 0.0
        %1755 = vmatpush1.msra.mxu0 0.0
        %1756 = vmatprep.subr.mxu0 0.0
        %1757 = vmatpush1.msra.mxu0 0.0
        %1758 = vmatprep.subr.mxu0 0.0
        %1759 = vmatpush1.msra.mxu0 0.0
        %1760 = vmatprep.subr.mxu0 0.0
        %1761 = vmatpush1.msra.mxu0 0.0
        %1762 = vmatprep.mubr.f32.mxu0 0.0
        %1763 = vmatmul.mubr.f32.gmra.mrb[0].mxu0 %v1696
        %v1764 = vpop.f32.mrb[0].mxu0
        %v1765 = vadd.f32 0.0, %v1764
        %v1766 = vpop.f32.mrb[0].mxu0
        %1767 = vdwg.mxu0
        %1769 = vrot.lane.b32.xlu0 %v1765, 16
        %v1770 = vpop.permute.xlu0 %1769
        %v1772 = vsel %vm812, %v1589, %v1770
        %v1774 = vsel %vm649, %v1772, 0
        %1776 = vmatprep.subr.mxu0 0.0
        %1777 = vmatpush1.msra.mxu0 %v1255
        %1778 = vmatprep.subr.mxu0 0.0
        %1779 = vmatpush1.msra.mxu0 %v1256
        %1780 = vmatprep.subr.mxu0 0.0
        %1781 = vmatpush1.msra.mxu0 %v1257
        %1782 = vmatprep.subr.mxu0 0.0
        %1783 = vmatpush1.msra.mxu0 %v1258
        %1784 = vmatprep.subr.mxu0 0.0
        %1785 = vmatpush1.msra.mxu0 0.0
        %1786 = vmatprep.subr.mxu0 0.0
        %1787 = vmatpush1.msra.mxu0 0.0
        %1788 = vmatprep.subr.mxu0 0.0
        %1789 = vmatpush1.msra.mxu0 0.0
        %1790 = vmatprep.subr.mxu0 0.0
        %1791 = vmatpush1.msra.mxu0 0.0
        %1792 = vmatprep.subr.mxu0 0.0
        %1793 = vmatpush1.msra.mxu0 0.0
        %1794 = vmatprep.subr.mxu0 0.0
        %1795 = vmatpush1.msra.mxu0 0.0
        %1796 = vmatprep.subr.mxu0 0.0
        %1797 = vmatpush1.msra.mxu0 0.0
        %1798 = vmatprep.subr.mxu0 0.0
        %1799 = vmatpush1.msra.mxu0 0.0
        %1800 = vmatprep.subr.mxu0 0.0
        %1801 = vmatpush1.msra.mxu0 0.0
        %1802 = vmatprep.subr.mxu0 0.0
        %1803 = vmatpush1.msra.mxu0 0.0
        %1804 = vmatprep.subr.mxu0 0.0
        %1805 = vmatpush1.msra.mxu0 0.0
        %1806 = vmatprep.subr.mxu0 0.0
        %1807 = vmatpush1.msra.mxu0 0.0
        %1808 = vmatprep.subr.mxu0 0.0
        %1809 = vmatpush1.msra.mxu0 0.0
        %1810 = vmatprep.subr.mxu0 0.0
        %1811 = vmatpush1.msra.mxu0 0.0
        %1812 = vmatprep.subr.mxu0 0.0
        %1813 = vmatpush1.msra.mxu0 0.0
        %1814 = vmatprep.subr.mxu0 0.0
        %1815 = vmatpush1.msra.mxu0 0.0
        %1816 = vmatprep.subr.mxu0 0.0
        %1817 = vmatpush1.msra.mxu0 0.0
        %1818 = vmatprep.subr.mxu0 0.0
        %1819 = vmatpush1.msra.mxu0 0.0
        %1820 = vmatprep.subr.mxu0 0.0
        %1821 = vmatpush1.msra.mxu0 0.0
        %1822 = vmatprep.subr.mxu0 0.0
        %1823 = vmatpush1.msra.mxu0 0.0
        %1824 = vmatprep.subr.mxu0 0.0
        %1825 = vmatpush1.msra.mxu0 0.0
        %1826 = vmatprep.subr.mxu0 0.0
        %1827 = vmatpush1.msra.mxu0 0.0
        %1828 = vmatprep.subr.mxu0 0.0
        %1829 = vmatpush1.msra.mxu0 0.0
        %1830 = vmatprep.subr.mxu0 0.0
        %1831 = vmatpush1.msra.mxu0 0.0
        %1832 = vmatprep.subr.mxu0 0.0
        %1833 = vmatpush1.msra.mxu0 0.0
        %1834 = vmatprep.subr.mxu0 0.0
        %1835 = vmatpush1.msra.mxu0 0.0
        %1836 = vmatprep.subr.mxu0 0.0
        %1837 = vmatpush1.msra.mxu0 0.0
        %1838 = vmatprep.subr.mxu0 0.0
        %1839 = vmatpush1.msra.mxu0 0.0
        %1840 = vmatprep.mubr.f32.mxu0 0.0
        %1841 = vmatmul.mubr.f32.gmra.mrb[0].mxu0 %v1774
        %v1842 = vpop.f32.mrb[0].mxu0
        %v1843 = vadd.f32 0.0, %v1842
        %v1844 = vpop.f32.mrb[0].mxu0
        %1845 = vdwg.mxu0
        %v1846 = vadd.f32 %v1250, %v1843
        %v1847 = vsel %vm649, %v1846, 0.0
        %1848 = vadd.xlane.f32.xlu0 %v1847
        %v1849 = vpop.xlane.xlu0 %1848
        %v1850 = vmul.f32 %v1849, %v1240
        %v1851 = vsub.f32 %v1846, %v1850
        %v1852 = vmul.f32 %v1851, %v1851
        %v1853 = vsel %vm649, %v1852, 0.0
        %1854 = vadd.xlane.f32.xlu0 %v1853
        %v1855 = vpop.xlane.xlu0 %1854
        %v1856 = vmul.f32 %v1855, %v1240
        %v1857 = vadd.f32 %v1856, 1e-05
        %v1858 = vrsqrt.pop %v1857
        %v1859 = vmul.f32 %v1851, %v1858
        %v1860 = vld [vmem:[#allocation12] sm:$0xff]
        %v1861 = vld [vmem:[#allocation12 + $0x8] sm:$0xff]
        %v1862 = vld [vmem:[#allocation12 + $0x10] sm:$0xff]
        %v1863 = vld [vmem:[#allocation12 + $0x18] sm:$0xff]
        %v1864 = vld [vmem:[%s9] sm:$0x1]
        %v1866 = vlaneseq
        %v1867 = vshrl.u32 %v1866, 7
        %v1868 = vsub.s32 0, %v1867
        %v1869 = vrot.slane %v1864, %v1868
        %v1872 = vsel %vm649, %v1859, 0
        %1874 = vmatprep.subr.mxu0 0.0
        %1875 = vmatpush1.msra.mxu0 %v1860
        %1876 = vmatprep.subr.mxu0 0.0
        %1877 = vmatpush1.msra.mxu0 %v1861
        %1878 = vmatprep.subr.mxu0 0.0
        %1879 = vmatpush1.msra.mxu0 %v1862
        %1880 = vmatprep.subr.mxu0 0.0
        %1881 = vmatpush1.msra.mxu0 %v1863
        %1882 = vmatprep.subr.mxu0 0.0
        %1883 = vmatpush1.msra.mxu0 0.0
        %1884 = vmatprep.subr.mxu0 0.0
        %1885 = vmatpush1.msra.mxu0 0.0
        %1886 = vmatprep.subr.mxu0 0.0
        %1887 = vmatpush1.msra.mxu0 0.0
        %1888 = vmatprep.subr.mxu0 0.0
        %1889 = vmatpush1.msra.mxu0 0.0
        %1890 = vmatprep.subr.mxu0 0.0
        %1891 = vmatpush1.msra.mxu0 0.0
        %1892 = vmatprep.subr.mxu0 0.0
        %1893 = vmatpush1.msra.mxu0 0.0
        %1894 = vmatprep.subr.mxu0 0.0
        %1895 = vmatpush1.msra.mxu0 0.0
        %1896 = vmatprep.subr.mxu0 0.0
        %1897 = vmatpush1.msra.mxu0 0.0
        %1898 = vmatprep.subr.mxu0 0.0
        %1899 = vmatpush1.msra.mxu0 0.0
        %1900 = vmatprep.subr.mxu0 0.0
        %1901 = vmatpush1.msra.mxu0 0.0
        %1902 = vmatprep.subr.mxu0 0.0
        %1903 = vmatpush1.msra.mxu0 0.0
        %1904 = vmatprep.subr.mxu0 0.0
        %1905 = vmatpush1.msra.mxu0 0.0
        %1906 = vmatprep.subr.mxu0 0.0
        %1907 = vmatpush1.msra.mxu0 0.0
        %1908 = vmatprep.subr.mxu0 0.0
        %1909 = vmatpush1.msra.mxu0 0.0
        %1910 = vmatprep.subr.mxu0 0.0
        %1911 = vmatpush1.msra.mxu0 0.0
        %1912 = vmatprep.subr.mxu0 0.0
        %1913 = vmatpush1.msra.mxu0 0.0
        %1914 = vmatprep.subr.mxu0 0.0
        %1915 = vmatpush1.msra.mxu0 0.0
        %1916 = vmatprep.subr.mxu0 0.0
        %1917 = vmatpush1.msra.mxu0 0.0
        %1918 = vmatprep.subr.mxu0 0.0
        %1919 = vmatpush1.msra.mxu0 0.0
        %1920 = vmatprep.subr.mxu0 0.0
        %1921 = vmatpush1.msra.mxu0 0.0
        %1922 = vmatprep.subr.mxu0 0.0
        %1923 = vmatpush1.msra.mxu0 0.0
        %1924 = vmatprep.subr.mxu0 0.0
        %1925 = vmatpush1.msra.mxu0 0.0
        %1926 = vmatprep.subr.mxu0 0.0
        %1927 = vmatpush1.msra.mxu0 0.0
        %1928 = vmatprep.subr.mxu0 0.0
        %1929 = vmatpush1.msra.mxu0 0.0
        %1930 = vmatprep.subr.mxu0 0.0
        %1931 = vmatpush1.msra.mxu0 0.0
        %1932 = vmatprep.subr.mxu0 0.0
        %1933 = vmatpush1.msra.mxu0 0.0
        %1934 = vmatprep.subr.mxu0 0.0
        %1935 = vmatpush1.msra.mxu0 0.0
        %1936 = vmatprep.subr.mxu0 0.0
        %1937 = vmatpush1.msra.mxu0 0.0
        %1938 = vmatprep.mubr.f32.mxu0 0.0
        %1939 = vmatmul.mubr.f32.gmra.mrb[0].mxu0 %v1872
        %v1940 = vpop.f32.mrb[0].mxu0
        %v1941 = vadd.f32 %v1869, %v1940
        %v1942 = vpop.f32.mrb[0].mxu0
        %1943 = vdwg.mxu0
        %v1944 = vld [vmem:[%s10] sm:$0xff]
        %v1945 = vld [vmem:[%s10 + $0x8] sm:$0xff]
        %v1946 = vld [vmem:[%s10 + $0x10] sm:$0xff]
        %v1947 = vld [vmem:[%s10 + $0x18] sm:$0xff]
        %v1948 = vld [vmem:[%s10 + $0x20] sm:$0xff]
        %v1949 = vld [vmem:[%s10 + $0x28] sm:$0xff]
        %v1950 = vld [vmem:[%s10 + $0x30] sm:$0xff]
        %v1951 = vld [vmem:[%s10 + $0x38] sm:$0xff]
        %v1952 = vld [vmem:[%s11] sm:$0x1]
        %v1954 = vlaneseq
        %v1955 = vshrl.u32 %v1954, 7
        %v1956 = vsub.s32 0, %v1955
        %v1957 = vrot.slane %v1952, %v1956
        %vm1959 = vcmask 523264
        %v1961 = vsel %vm1959, %v1941, 0
        %1963 = vmatprep.subr.mxu0 0.0
        %1964 = vmatpush1.msra.mxu0 %v1944
        %1965 = vmatprep.subr.mxu0 0.0
        %1966 = vmatpush1.msra.mxu0 %v1945
        %1967 = vmatprep.subr.mxu0 0.0
        %1968 = vmatpush1.msra.mxu0 %v1946
        %1969 = vmatprep.subr.mxu0 0.0
        %1970 = vmatpush1.msra.mxu0 %v1947
        %1971 = vmatprep.subr.mxu0 0.0
        %1972 = vmatpush1.msra.mxu0 %v1948
        %1973 = vmatprep.subr.mxu0 0.0
        %1974 = vmatpush1.msra.mxu0 %v1949
        %1975 = vmatprep.subr.mxu0 0.0
        %1976 = vmatpush1.msra.mxu0 %v1950
        %1977 = vmatprep.subr.mxu0 0.0
        %1978 = vmatpush1.msra.mxu0 %v1951
        %1979 = vmatprep.subr.mxu0 0.0
        %1980 = vmatpush1.msra.mxu0 0.0
        %1981 = vmatprep.subr.mxu0 0.0
        %1982 = vmatpush1.msra.mxu0 0.0
        %1983 = vmatprep.subr.mxu0 0.0
        %1984 = vmatpush1.msra.mxu0 0.0
        %1985 = vmatprep.subr.mxu0 0.0
        %1986 = vmatpush1.msra.mxu0 0.0
        %1987 = vmatprep.subr.mxu0 0.0
        %1988 = vmatpush1.msra.mxu0 0.0
        %1989 = vmatprep.subr.mxu0 0.0
        %1990 = vmatpush1.msra.mxu0 0.0
        %1991 = vmatprep.subr.mxu0 0.0
        %1992 = vmatpush1.msra.mxu0 0.0
        %1993 = vmatprep.subr.mxu0 0.0
        %1994 = vmatpush1.msra.mxu0 0.0
        %1995 = vmatprep.subr.mxu0 0.0
        %1996 = vmatpush1.msra.mxu0 0.0
        %1997 = vmatprep.subr.mxu0 0.0
        %1998 = vmatpush1.msra.mxu0 0.0
        %1999 = vmatprep.subr.mxu0 0.0
        %2000 = vmatpush1.msra.mxu0 0.0
        %2001 = vmatprep.subr.mxu0 0.0
        %2002 = vmatpush1.msra.mxu0 0.0
        %2003 = vmatprep.subr.mxu0 0.0
        %2004 = vmatpush1.msra.mxu0 0.0
        %2005 = vmatprep.subr.mxu0 0.0
        %2006 = vmatpush1.msra.mxu0 0.0
        %2007 = vmatprep.subr.mxu0 0.0
        %2008 = vmatpush1.msra.mxu0 0.0
        %2009 = vmatprep.subr.mxu0 0.0
        %2010 = vmatpush1.msra.mxu0 0.0
        %2011 = vmatprep.subr.mxu0 0.0
        %2012 = vmatpush1.msra.mxu0 0.0
        %2013 = vmatprep.subr.mxu0 0.0
        %2014 = vmatpush1.msra.mxu0 0.0
        %2015 = vmatprep.subr.mxu0 0.0
        %2016 = vmatpush1.msra.mxu0 0.0
        %2017 = vmatprep.subr.mxu0 0.0
        %2018 = vmatpush1.msra.mxu0 0.0
        %2019 = vmatprep.subr.mxu0 0.0
        %2020 = vmatpush1.msra.mxu0 0.0
        %2021 = vmatprep.subr.mxu0 0.0
        %2022 = vmatpush1.msra.mxu0 0.0
        %2023 = vmatprep.subr.mxu0 0.0
        %2024 = vmatpush1.msra.mxu0 0.0
        %2025 = vmatprep.subr.mxu0 0.0
        %2026 = vmatpush1.msra.mxu0 0.0
        %2027 = vmatprep.mubr.f32.mxu0 0.0
        %2028 = vmatmul.mubr.f32.gmra.mrb[0].mxu0 %v1961
        %v2029 = vpop.f32.mrb[0].mxu0
        %v2030 = vadd.f32 %v1957, %v2029
        %v2031 = vpop.f32.mrb[0].mxu0
        %2032 = vdwg.mxu0
        %v2033 = vadd.f32 %v1859, %v2030
        %v2034 = vsel %vm649, %v2033, 0.0
        %2035 = vadd.xlane.f32.xlu0 %v2034
        %v2036 = vpop.xlane.xlu0 %2035
        %v2037 = vmul.f32 %v2036, %v1240
        %v2038 = vsub.f32 %v2033, %v2037
        %v2039 = vmul.f32 %v2038, %v2038
        %v2040 = vsel %vm649, %v2039, 0.0
        %2041 = vadd.xlane.f32.xlu0 %v2040
        %v2042 = vpop.xlane.xlu0 %2041
        %v2043 = vmul.f32 %v2042, %v1240
        %v2044 = vadd.f32 %v2043, 1e-05
        %v2045 = vrsqrt.pop %v2044
        %v2046 = vmul.f32 %v2038, %v2045
        %2047 = vst.msk [vmem:[#allocation2] sm:$0xff] %vm649, %v2046
        %p2048 = scmp.eq.s32.totalorder %s39, 1
        // Predicated region
        $region97: #{tpu_custom_call.1} parent=67 // pred_check
          %p2049 = pneg %p2048
        $region98: #{tpu_custom_call.1} parent=67 // pred_check_branch
          %2051 = sbr.rel (%p2049) target = $region100
        $region99: #{tpu_custom_call.1} parent=67 // pred_region
          %2052 = vst.msk [vmem:[%s595] sm:$0xff] %vm649, %v2046
        $region100: #{tpu_custom_call.1} parent=67 // pred_fallthru
          _
        %s2053 = sand.u32 %s336, 1
        %s2054 = scalar_lea.sflag [#allocation5], %s2053
        %s2055 = sand.u32 %s336, 1
        %s2056 = smul.addr %s2055, 8
        %s2057 = scalar_lea.vmem [#allocation14], %s2056
        // Predicated region
        $region101: #{tpu_custom_call.1} parent=67 // pred_check
          %p2058 = pneg %p346
        $region102: #{tpu_custom_call.1} parent=67 // pred_check_branch
          %2060 = sbr.rel (%p2058) target = $region104
        $region103: #{tpu_custom_call.1} parent=67 // pred_region
          %s2062 = ssub.s32 128, 128
          %2063 = vsyncadd %s2054, %s2062
          %s2064 = smul.addr %s38, 128
          %s2065 = scalar_lea.hbm %s12, %s2064
          %s2067 = sshll.u32 %s2057, 4
          %s2068 = int_to_ptr.vmem [resolvable:$true] %s2067
          %2070 = dma.vmem_to_hbm [thread:$0]  %s2068, 128, %s2065, %s2054
        $region104: #{tpu_custom_call.1} parent=67 // pred_fallthru
          _
      $region68: #{tpu_custom_call.1} parent=5 // pred_fallthru
        _
      %p2071 = scmp.le.s32.totalorder 2, %s29
      // Predicated region
      $region105: #{tpu_custom_call.1} parent=5 // pred_check
        %p2072 = pneg %p2071
      $region106: #{tpu_custom_call.1} parent=5 // pred_check_branch
        %2074 = sbr.rel (%p2072) target = $region108
      $region107: #{tpu_custom_call.1} parent=5 // pred_region
        %s2075 = ssub.s32 %s29, 2
        // Predicated region
        $region109: #{tpu_custom_call.1} parent=107 // pred_check
          %p2076 = pneg %p352
        $region110: #{tpu_custom_call.1} parent=107 // pred_check_branch
          %2078 = sbr.rel (%p2076) target = $region112
        $region111: #{tpu_custom_call.1} parent=107 // pred_region
          %s2079 = sand.u32 %s337, 1
          %s2080 = scalar_lea.sflag [#allocation5], %s2079
          %s2081 = sand.u32 %s337, 1
          %s2082 = smul.addr %s2081, 8
          %s2083 = scalar_lea.vmem [#allocation14], %s2082
          %2084 = dma.done %s2080, 128
        $region112: #{tpu_custom_call.1} parent=107 // pred_fallthru
          _
      $region108: #{tpu_custom_call.1} parent=5 // pred_fallthru
        _
    $region6: #{tpu_custom_call.1} parent=1 // loop_footer
      %s33 = sadd.s32 1, %s29
    $region7: #{tpu_custom_call.1} parent=1 // loop_footer_branch
      %28 = sbr.rel target = $region3
    $region8: #{tpu_custom_call.1} parent=1 // loop_exit
      _
    %2085 = vsyncpa [#allocation4], 1
    %s2086 = scalar_lea.sflag [#allocation4], 1
    %2087 = vsyncpa %s2086, 1
    %2088 = vsyncpa [#allocation7], 1
    %s2089 = scalar_lea.sflag [#allocation7], 1
    %2090 = vsyncpa %s2089, 1
    %2091 = vsyncpa [#allocation10], 1
    %2092 = vsyncpa [#allocation13], 1
    %2093 = vsyncpa [#allocation5], 1
    %s2094 = scalar_lea.sflag [#allocation5], 1
    %2095 = vsyncpa %s2094, 1

</llo_original>
